<compile_context>
chip_gen: v6e
topology: v6e:2x2x1
jax: 0.10.0
libtpu: 0.0.40
codegen_flags: <defaults>
</compile_context>

<pallas_src>
import functools

import jax
import jax.numpy as jnp
from jax.experimental import pallas as pl
from jax.experimental.pallas import tpu as pltpu

TAU = 2.0            # spikingjelly LIFNode default tau
V_TH = 1.0           # default v_threshold (hard reset to v_reset = 0)
INV_TAU = 1.0 / TAU
BN_EPS = 1e-5        # nn.BatchNorm2d default eps
# TODO(synk): surrogate-gradient (ATan) only affects backward; forward uses the exact Heaviside.


def _tpu_budget():
    """Generation-aware (vmem_limit, max_rows, max_lanes_lif, max_lanes_attn)."""
    cap = None
    try:
        cap = getattr(pltpu.get_tpu_info(), "vmem_capacity_bytes", None)
    except Exception:
        cap = None
    if cap is not None and cap >= 96 * 1024 * 1024:
        # v5e / v6e: 128 MiB physical VMEM -> bigger tiles, higher scoped limit.
        return 96 * 1024 * 1024, 512, 2048, 1024
    # v7x-safe defaults (64 MiB physical VMEM per core).
    return 40 * 1024 * 1024, 256, 1024, 512


VMEM_LIMIT, MAX_ROWS, MAX_LANES_LIF, MAX_LANES_ATTN = _tpu_budget()


def _row_tile(m, max_rows):
    """Sublane tile: multiple of 8; split in two when it fits so >=2 parallel steps exist."""
    if m > max_rows:
        return max(8, (max_rows // 8) * 8)
    if m >= 16 and m % 2 == 0 and (m // 2) % 8 == 0:
        return m // 2
    return m


def _lane_tile(n, max_lanes):
    """Lane tile: multiple of 128 (or full); split in two when cleanly possible."""
    if n > max_lanes:
        return max(128, (max_lanes // 128) * 128)
    if n % 256 == 0:
        return n // 2
    return n


# ------------------------- LIF neuron over time (stateful, row+lane tiled) -------------------------
def _lif_kernel(x_ref, o_ref, v_ref):
    t = pl.program_id(2)

    @pl.when(t == 0)
    def _():
        v_ref[...] = jnp.zeros_like(v_ref)

    x = x_ref[...].astype(jnp.float32)
    v = v_ref[...]
    chg = v + (x - v) * INV_TAU            # charge
    fired = chg >= V_TH                    # fire
    v_ref[...] = jnp.where(fired, 0.0, chg)   # hard reset
    o_ref[...] = fired.astype(o_ref.dtype)


def lif(x, *, out_dtype=jnp.bfloat16, max_rows=MAX_ROWS, max_lanes=MAX_LANES_LIF):
    # x: (T, M, N) f32 -> spikes (T, M, N) in out_dtype (bf16 is lossless for {0,1}).
    # Grid (m, n, T); T innermost so the per-tile membrane scratch carries over time.
    T, M, N = x.shape
    tm = _row_tile(M, max_rows)
    tn = _lane_tile(N, max_lanes)
    return pl.pallas_call(
        _lif_kernel,
        out_shape=jax.ShapeDtypeStruct((T, M, N), out_dtype),
        grid=(pl.cdiv(M, tm), pl.cdiv(N, tn), T),
        in_specs=[pl.BlockSpec((None, tm, tn), lambda m, n, t: (t, m, n))],
        out_specs=pl.BlockSpec((None, tm, tn), lambda m, n, t: (t, m, n)),
        scratch_shapes=[pltpu.VMEM((tm, tn), jnp.float32)],
        compiler_params=pltpu.CompilerParams(
            dimension_semantics=("parallel", "parallel", "arbitrary"),
            vmem_limit_bytes=VMEM_LIMIT,
        ),
    )(x)


# --------------- patchify conv (+ folded BN + folded per-head scales) as bf16 matmul ---------------
def _patch_conv_kernel(x_ref, w_ref, b_ref, y_ref):
    # x_ref: (K, Np) bf16 spike columns of one (t, b); w_ref: (2C, K) bf16; b_ref: (2C, 1) f32
    acc = jnp.dot(w_ref[...], x_ref[...], preferred_element_type=jnp.float32)
    y_ref[...] = (acc + b_ref[...]).astype(y_ref.dtype)


def patch_conv(x_cols, w, b, *, out_dtype=jnp.bfloat16):
    # x_cols: (T, B, K, Np) bf16; w: (Cout, K) bf16; b: (Cout, 1) f32 -> y: (T, B, Cout, Np)
    # Channel-major output: feeds the fused attention kernel with no further transposes.
    T, B, K, Np = x_cols.shape
    Cout = w.shape[0]
    return pl.pallas_call(
        _patch_conv_kernel,
        out_shape=jax.ShapeDtypeStruct((T, B, Cout, Np), out_dtype),
        grid=(T, B),
        in_specs=[
            pl.BlockSpec((None, None, K, Np), lambda t, b: (t, b, 0, 0)),
            # TODO(synk): grid-invariant weight/bias could be single-buffered (pl.Buffered(1))
            #             to save VMEM on v7x; left double-buffered for portability.
            pl.BlockSpec((Cout, K), lambda t, b: (0, 0)),
            pl.BlockSpec((Cout, 1), lambda t, b: (0, 0)),
        ],
        out_specs=pl.BlockSpec((None, None, Cout, Np), lambda t, b: (t, b, 0, 0)),
        compiler_params=pltpu.CompilerParams(
            dimension_semantics=("parallel", "parallel"),
            vmem_limit_bytes=VMEM_LIMIT,
        ),
    )(x_cols, w, b)


# -------- fused: input-LIF (recompute) + DSSA attention + output-LIF + 1x1 proj + BN + residual --------
def _dssa_fused_kernel(x_ref, y_ref, wp_ref, bp_ref, o_ref,
                       v_in, v_attn, acc, v_out, *, num_heads, cph):
    t = pl.program_id(2)

    @pl.when(t == 0)
    def _():
        v_in[...] = jnp.zeros_like(v_in)
        v_attn[...] = jnp.zeros_like(v_attn)
        v_out[...] = jnp.zeros_like(v_out)

    x = x_ref[...]                                     # (C, tn) f32 raw input (also the residual)

    # activation_in: recompute the spikes for this tile (x f32 is already resident for the
    # residual, so this saves re-reading the bf16 spike tensor from HBM).
    v0 = v_in[...]
    chg0 = v0 + (x - v0) * INV_TAU
    fire0 = chg0 >= V_TH
    v_in[...] = jnp.where(fire0, 0.0, chg0)
    x_spk = fire0.astype(jnp.float32)                  # f32 so per-head sublane slices stay tile-aligned

    # DSSA attention, all heads unrolled back-to-back in one grid step.
    # NOTE: slices are sublane-aligned when (dim // num_heads) % 8 == 0; other configs are
    # correct but fall into masked sub-tile accesses.
    for h in range(num_heads):
        y1_h = y_ref[h, pl.ds(0, cph), :]              # (Cph, Np) bf16, BN + scale1 folded in
        y2_h = y_ref[h, pl.ds(cph, cph), :]            # (Cph, Np) bf16, BN + scale2 folded in
        x_h = x_spk[h * cph:(h + 1) * cph, :].astype(jnp.bfloat16)   # (Cph, tn) spikes

        # attn_pre = y1^T @ x_spk  (contraction over the per-head channel dim)
        attn = jax.lax.dot_general(
            y1_h, x_h,
            dimension_numbers=(((0,), (0,)), ((), ())),
            preferred_element_type=jnp.float32)        # (Np, tn)

        # LIF on attn; membrane persists across the sequential T axis per (b, head, n-tile)
        va = v_attn[h]
        chg1 = va + (attn - va) * INV_TAU
        fire1 = chg1 >= V_TH
        v_attn[h] = jnp.where(fire1, 0.0, chg1)
        attn_spk = fire1.astype(jnp.bfloat16)          # (Np, tn)

        # out = y2 @ attn_spk
        out_h = jnp.dot(y2_h, attn_spk, preferred_element_type=jnp.float32)   # (Cph, tn)
        acc[pl.ds(h * cph, cph), :] = out_h

    # activation_out + 1x1 projection (+ folded BN) + residual, all on the (C, tn) tile.
    o_pre = acc[...]
    v2 = v_out[...]
    chg2 = v2 + (o_pre - v2) * INV_TAU
    fire2 = chg2 >= V_TH
    v_out[...] = jnp.where(fire2, 0.0, chg2)
    out_spk = fire2.astype(jnp.bfloat16)               # (C, tn)

    proj = jnp.dot(wp_ref[...], out_spk, preferred_element_type=jnp.float32)  # (C, tn)
    o_ref[...] = (proj + bp_ref[...] + x).astype(o_ref.dtype)


def dssa_attention(x_feat, y, w_proj, b_proj, *, num_heads, max_lanes=MAX_LANES_ATTN):
    # x_feat: (T, B, C, N) f32 raw input; y: (T, B, Hd, 2*Cph, Np) bf16 (BN + scales folded)
    # w_proj: (C, C) bf16 folded 1x1 weight; b_proj: (C, 1) f32 folded bias.
    T, B, C, N = x_feat.shape
    Hd = num_heads
    Cph = C // Hd
    Np = y.shape[-1]
    tn = _lane_tile(N, max_lanes)
    kernel = functools.partial(_dssa_fused_kernel, num_heads=Hd, cph=Cph)
    return pl.pallas_call(
        kernel,
        out_shape=jax.ShapeDtypeStruct((T, B, C, N), jnp.float32),
        grid=(B, pl.cdiv(N, tn), T),   # T innermost so all LIF membranes carry over time
        in_specs=[
            pl.BlockSpec((None, None, C, tn), lambda b, n, t: (t, b, 0, n)),
            pl.BlockSpec((None, None, Hd, 2 * Cph, Np), lambda b, n, t: (t, b, 0, 0, 0)),
            # TODO(synk): grid-invariant w_proj / b_proj could use pl.Buffered(1) on v7x.
            pl.BlockSpec((C, C), lambda b, n, t: (0, 0)),
            pl.BlockSpec((C, 1), lambda b, n, t: (0, 0)),
        ],
        out_specs=pl.BlockSpec((None, None, C, tn), lambda b, n, t: (t, b, 0, n)),
        scratch_shapes=[
            pltpu.VMEM((C, tn), jnp.float32),          # v_in   (input-LIF membrane)
            pltpu.VMEM((Hd, Np, tn), jnp.float32),     # v_attn (attention-LIF membrane)
            pltpu.VMEM((C, tn), jnp.float32),          # acc    (pre-activation out)
            pltpu.VMEM((C, tn), jnp.float32),          # v_out  (output-LIF membrane)
        ],
        compiler_params=pltpu.CompilerParams(
            dimension_semantics=("parallel", "parallel", "arbitrary"),
            vmem_limit_bytes=VMEM_LIMIT,
        ),
    )(x_feat, y, w_proj, b_proj)


# ---------------------------------- parameters ----------------------------------
def init_params(key, dim, num_heads, patch):
    ks = jax.random.split(key, 12)
    cpp = dim * patch * patch
    params = {
        # W: Conv2d(dim, 2*dim, patch, patch, bias=False)
        "W_conv": jax.random.normal(ks[0], (2 * dim, dim, patch, patch), jnp.float32)
        / jnp.sqrt(float(cpp)),
        # Wproj: Conv1x1(dim, dim, bias=False)
        "W_proj": jax.random.normal(ks[1], (dim, dim, 1, 1), jnp.float32)
        / jnp.sqrt(float(dim)),
        # BN(2*dim) running stats / affine (eval mode)
        "bn_W": {
            "gamma": 1.0 + 0.1 * jax.random.normal(ks[2], (2 * dim,), jnp.float32),
            "beta": 0.1 * jax.random.normal(ks[3], (2 * dim,), jnp.float32),
            "mean": 0.05 * jax.random.normal(ks[4], (2 * dim,), jnp.float32),
            "var": 0.5 + 0.5 * jnp.abs(jax.random.normal(ks[5], (2 * dim,), jnp.float32)),
        },
        # BN(dim) for the projection
        "bn_proj": {
            "gamma": 1.0 + 0.1 * jax.random.normal(ks[6], (dim,), jnp.float32),
            "beta": 0.1 * jax.random.normal(ks[7], (dim,), jnp.float32),
            "mean": 0.05 * jax.random.normal(ks[8], (dim,), jnp.float32),
            "var": 0.5 + 0.5 * jnp.abs(jax.random.normal(ks[9], (dim,), jnp.float32)),
        },
        # firing-rate buffers (zeros in the module; EMA-updated only in training).
        # Deterministic nonzero values so 1/sqrt(...) is finite in eval.
        "fr_x": jnp.full((num_heads,), 0.30, jnp.float32),
        "fr_attn": jnp.full((num_heads,), 0.15, jnp.float32),
    }
    return params


# ----------------------------------- forward -----------------------------------
def dssa_forward(x, params, *, num_heads, patch_size):
    T, B, C, H, W = x.shape
    Hd = num_heads
    Cph = C // Hd
    p = patch_size
    Hp, Wp = H // p, W // p
    Np = Hp * Wp          # == lenth
    N = H * W
    K = C * p * p

    x_flat = x.reshape(T, B, C, N)     # residual / raw input in (C, N) layout (free reshape)

    # activation_in: LIF over time (spikes needed in HBM only for the patchify-conv path).
    x_spk = lif(x.reshape(T, B * C, N))                               # (T, B*C, N) bf16

    # im2col for the stride-p patchify conv: (T,B,C,Hp,p,Wp,p) -> (T, B, (c,i,j), (hp,wp)).
    # TODO(synk): this is still one XLA transpose pass over the bf16 spikes; folding it into
    #             the matmul kernel would need an in-kernel (C,p,p)-window gather per patch.
    x_cols = x_spk.reshape(T, B, C, Hp, p, Wp, p)
    x_cols = x_cols.transpose(0, 1, 2, 4, 6, 3, 5).reshape(T, B, K, Np)

    # Fold BN and the per-head scale1/scale2 into the conv weight/bias (exact: both attention
    # matmuls are linear in y1 / y2 respectively).
    bn = params["bn_W"]
    inv = bn["gamma"] * jax.lax.rsqrt(bn["var"] + BN_EPS)              # (2C,)
    scale1 = 1.0 / jnp.sqrt(params["fr_x"] * float(Cph))               # (Hd,)
    scale2 = 1.0 / jnp.sqrt(params["fr_attn"] * float(Np))             # (Hd,)
    s = jnp.broadcast_to(
        jnp.stack([scale1, scale2], axis=1)[:, :, None], (Hd, 2, Cph)).reshape(2 * C)
    w_flat = params["W_conv"].reshape(2 * C, K)
    w_fold = (w_flat * (inv * s)[:, None]).astype(jnp.bfloat16)        # (2C, K)
    b_fold = ((bn["beta"] - bn["mean"] * inv) * s)[:, None]            # (2C, 1) f32

    y = patch_conv(x_cols, w_fold, b_fold)                             # (T, B, 2C, Np) bf16
    y = y.reshape(T, B, Hd, 2 * Cph, Np)                               # free per-head split

    # Fold BN_proj into the 1x1 projection.
    bnp = params["bn_proj"]
    inv2 = bnp["gamma"] * jax.lax.rsqrt(bnp["var"] + BN_EPS)
    w_proj = (params["W_proj"].reshape(C, C) * inv2[:, None]).astype(jnp.bfloat16)
    b_proj = (bnp["beta"] - bnp["mean"] * inv2)[:, None]               # (C, 1) f32

    # Fused: input-LIF (recompute) + DSSA attention + output-LIF + proj + BN + residual.
    o = dssa_attention(x_flat, y, w_proj, b_proj, num_heads=Hd)        # (T, B, C, N) f32
    return o.reshape(T, B, C, H, W)


if __name__ == "__main__":
    # Small shapes consistent with the module: dim % num_heads == 0, H, W divisible by patch.
    T, B = 2, 2
    dim, num_heads = 32, 4
    H = W = 16
    patch = 4  # lenth = (H//patch) * (W//patch) = 16

    key = jax.random.PRNGKey(0)
    kx, kp = jax.random.split(key)
    x = jax.random.normal(kx, (T, B, dim, H, W), jnp.float32)
    params = init_params(kp, dim, num_heads, patch)

    fwd = jax.jit(functools.partial(dssa_forward, num_heads=num_heads, patch_size=patch))
    out = jax.block_until_ready(fwd(x, params))

    assert out.shape == (T, B, dim, H, W), out.shape
    assert bool(jnp.all(jnp.isfinite(out)))
    print("KERNEL_OK")
</pallas_src>

<mosaic_0001>
module attributes {stable_mosaic.version = 11 : i64} {
  func.func @_lif_kernel(%arg0: i32, %arg1: i32, %arg2: i32, %arg3: memref<1x32x128xf32, #tpu.memory_space<vmem>>, %arg4: memref<1x32x128xbf16, #tpu.memory_space<vmem>>, %arg5: memref<32x128xf32, #tpu.memory_space<vmem>>) attributes {dimension_semantics = [#tpu.dimension_semantics<parallel>, #tpu.dimension_semantics<parallel>, #tpu.dimension_semantics<arbitrary>], iteration_bounds = array<i64: 2, 2, 2>, scalar_prefetch = 0 : i64, scratch_operands = 1 : i64, tpu.core_type = #tpu.core_type<tc>, window_params = [{transform_indices = @transform_0, window_bounds = array<i64: 1, 32, 128>}, {transform_indices = @transform_1, window_bounds = array<i64: 1, 32, 128>}]} {
    %c0_i32 = arith.constant 0 : i32
    %0 = arith.cmpi eq, %arg2, %c0_i32 : i32
    %1 = arith.extui %0 : i1 to i32
    %c0_i32_0 = arith.constant 0 : i32
    %2 = arith.cmpi ne, %1, %c0_i32_0 : i32
    scf.if %2 {
      %cst_12 = arith.constant 0.000000e+00 : f32
      %21 = vector.broadcast %cst_12 : f32 to vector<32x128xf32>
      %c0_13 = arith.constant 0 : index
      %c0_14 = arith.constant 0 : index
      %22 = vector.load %arg5[%c0_13, %c0_14] : memref<32x128xf32, #tpu.memory_space<vmem>>, vector<32x128xf32>
      tpu.vector_store %arg5[%c0_13, %c0_14], %21 {strides = array<i32>} : memref<32x128xf32, #tpu.memory_space<vmem>>, vector<32x128xf32>,
    } else {
    }
    %c0 = arith.constant 0 : index
    %c0_1 = arith.constant 0 : index
    %c0_2 = arith.constant 0 : index
    %3 = vector.load %arg3[%c0, %c0_1, %c0_2] : memref<1x32x128xf32, #tpu.memory_space<vmem>>, vector<1x32x128xf32>
    %4 = vector.shape_cast %3 : vector<1x32x128xf32> to vector<32x128xf32>
    %c0_3 = arith.constant 0 : index
    %c0_4 = arith.constant 0 : index
    %5 = vector.load %arg5[%c0_3, %c0_4] : memref<32x128xf32, #tpu.memory_space<vmem>>, vector<32x128xf32>
    %6 = arith.subf %4, %5 : vector<32x128xf32>
    %cst = arith.constant 5.000000e-01 : f32
    %7 = vector.broadcast %cst : f32 to vector<32x128xf32>
    %8 = arith.mulf %6, %7 : vector<32x128xf32>
    %9 = arith.addf %5, %8 : vector<32x128xf32>
    %cst_5 = arith.constant 1.000000e+00 : f32
    %10 = vector.broadcast %cst_5 : f32 to vector<32x128xf32>
    %11 = arith.cmpf oge, %9, %10 : vector<32x128xf32>
    %cst_6 = arith.constant 0.000000e+00 : f32
    %12 = vector.broadcast %cst_6 : f32 to vector<32x128xf32>
    %13 = arith.select %11, %12, %9 : vector<32x128xi1>, vector<32x128xf32>
    %c0_7 = arith.constant 0 : index
    %c0_8 = arith.constant 0 : index
    %14 = vector.load %arg5[%c0_7, %c0_8] : memref<32x128xf32, #tpu.memory_space<vmem>>, vector<32x128xf32>
    tpu.vector_store %arg5[%c0_7, %c0_8], %13 {strides = array<i32>} : memref<32x128xf32, #tpu.memory_space<vmem>>, vector<32x128xf32>,
    %15 = arith.extui %11 : vector<32x128xi1> to vector<32x128xi32>
    %16 = arith.sitofp %15 : vector<32x128xi32> to vector<32x128xf32>
    %17 = arith.truncf %16 : vector<32x128xf32> to vector<32x128xbf16>
    %c0_9 = arith.constant 0 : index
    %c0_10 = arith.constant 0 : index
    %c0_11 = arith.constant 0 : index
    %18 = vector.load %arg4[%c0_9, %c0_10, %c0_11] : memref<1x32x128xbf16, #tpu.memory_space<vmem>>, vector<1x32x128xbf16>
    %19 = vector.shape_cast %18 : vector<1x32x128xbf16> to vector<32x128xbf16>
    %20 = vector.shape_cast %17 : vector<32x128xbf16> to vector<1x32x128xbf16>
    tpu.vector_store %arg4[%c0_9, %c0_10, %c0_11], %20 {strides = array<i32>} : memref<1x32x128xbf16, #tpu.memory_space<vmem>>, vector<1x32x128xbf16>,
    return
  }
  func.func @transform_0(%arg0: i32, %arg1: i32, %arg2: i32) -> (i32, i32, i32) {
    %c0_i32 = arith.constant 0 : i32
    return %arg2, %arg0, %arg1 : i32, i32, i32
  }
  func.func @transform_1(%arg0: i32, %arg1: i32, %arg2: i32) -> (i32, i32, i32) {
    %c0_i32 = arith.constant 0 : i32
    return %arg2, %arg0, %arg1 : i32, i32, i32
  }
}

module attributes {stable_mosaic.version = 11 : i64} {
  func.func @_patch_conv_kernel(%arg0: i32, %arg1: i32, %arg2: memref<1x1x512x16xbf16, #tpu.memory_space<vmem>>, %arg3: memref<64x512xbf16, #tpu.memory_space<vmem>>, %arg4: memref<64x1xf32, #tpu.memory_space<vmem>>, %arg5: memref<1x1x64x16xbf16, #tpu.memory_space<vmem>>) attributes {dimension_semantics = [#tpu.dimension_semantics<parallel>, #tpu.dimension_semantics<parallel>], iteration_bounds = array<i64: 2, 2>, scalar_prefetch = 0 : i64, scratch_operands = 0 : i64, tpu.core_type = #tpu.core_type<tc>, window_params = [{transform_indices = @transform_0, window_bounds = array<i64: 1, 1, 512, 16>}, {pipeline_mode = #tpu.pipeline_mode<synchronous>, transform_indices = @transform_1, window_bounds = array<i64: 64, 512>}, {pipeline_mode = #tpu.pipeline_mode<synchronous>, transform_indices = @transform_2, window_bounds = array<i64: 64, 1>}, {transform_indices = @transform_3, window_bounds = array<i64: 1, 1, 64, 16>}]} {
    %c0 = arith.constant 0 : index
    %c0_0 = arith.constant 0 : index
    %0 = vector.load %arg3[%c0, %c0_0] : memref<64x512xbf16, #tpu.memory_space<vmem>>, vector<64x512xbf16>
    %c0_1 = arith.constant 0 : index
    %c0_2 = arith.constant 0 : index
    %c0_3 = arith.constant 0 : index
    %c0_4 = arith.constant 0 : index
    %1 = vector.load %arg2[%c0_1, %c0_2, %c0_3, %c0_4] : memref<1x1x512x16xbf16, #tpu.memory_space<vmem>>, vector<1x1x512x16xbf16>
    %2 = vector.shape_cast %1 : vector<1x1x512x16xbf16> to vector<512x16xbf16>
    %cst = arith.constant dense<0.000000e+00> : vector<64x16xf32>
    %3 = tpu.matmul %0, %2, %cst {dimension_numbers = #tpu.dot_dimension_numbers<[1], [0], [0], [1], [0, 0, 1, 1], [], []>} : vector<64x512xbf16>, vector<512x16xbf16>, vector<64x16xf32> -> vector<64x16xf32>
    %c0_5 = arith.constant 0 : index
    %c0_6 = arith.constant 0 : index
    %4 = vector.load %arg4[%c0_5, %c0_6] : memref<64x1xf32, #tpu.memory_space<vmem>>, vector<64x1xf32>
    %5 = vector.broadcast %4 : vector<64x1xf32> to vector<64x16xf32>
    %6 = arith.addf %3, %5 : vector<64x16xf32>
    %7 = arith.truncf %6 : vector<64x16xf32> to vector<64x16xbf16>
    %c0_7 = arith.constant 0 : index
    %c0_8 = arith.constant 0 : index
    %c0_9 = arith.constant 0 : index
    %c0_10 = arith.constant 0 : index
    %8 = vector.load %arg5[%c0_7, %c0_8, %c0_9, %c0_10] : memref<1x1x64x16xbf16, #tpu.memory_space<vmem>>, vector<1x1x64x16xbf16>
    %9 = vector.shape_cast %8 : vector<1x1x64x16xbf16> to vector<64x16xbf16>
    %10 = vector.shape_cast %7 : vector<64x16xbf16> to vector<1x1x64x16xbf16>
    tpu.vector_store %arg5[%c0_7, %c0_8, %c0_9, %c0_10], %10 {strides = array<i32>} : memref<1x1x64x16xbf16, #tpu.memory_space<vmem>>, vector<1x1x64x16xbf16>,
    return
  }
  func.func @transform_0(%arg0: i32, %arg1: i32) -> (i32, i32, i32, i32) {
    %c0_i32 = arith.constant 0 : i32
    %c0_i32_0 = arith.constant 0 : i32
    %c0_i32_1 = arith.constant 0 : i32
    return %arg0, %arg1, %c0_i32, %c0_i32_0 : i32, i32, i32, i32
  }
  func.func @transform_1(%arg0: i32, %arg1: i32) -> (i32, i32) {
    %c0_i32 = arith.constant 0 : i32
    %c0_i32_0 = arith.constant 0 : i32
    %c0_i32_1 = arith.constant 0 : i32
    return %c0_i32, %c0_i32_0 : i32, i32
  }
  func.func @transform_2(%arg0: i32, %arg1: i32) -> (i32, i32) {
    %c0_i32 = arith.constant 0 : i32
    %c0_i32_0 = arith.constant 0 : i32
    %c0_i32_1 = arith.constant 0 : i32
    return %c0_i32, %c0_i32_0 : i32, i32
  }
  func.func @transform_3(%arg0: i32, %arg1: i32) -> (i32, i32, i32, i32) {
    %c0_i32 = arith.constant 0 : i32
    %c0_i32_0 = arith.constant 0 : i32
    %c0_i32_1 = arith.constant 0 : i32
    return %arg0, %arg1, %c0_i32, %c0_i32_0 : i32, i32, i32, i32
  }
}

module attributes {stable_mosaic.version = 11 : i64} {
  func.func @_dssa_fused_kernel(%arg0: i32, %arg1: i32, %arg2: i32, %arg3: memref<1x1x32x128xf32, #tpu.memory_space<vmem>>, %arg4: memref<1x1x4x16x16xbf16, #tpu.memory_space<vmem>>, %arg5: memref<32x32xbf16, #tpu.memory_space<vmem>>, %arg6: memref<32x1xf32, #tpu.memory_space<vmem>>, %arg7: memref<1x1x32x128xf32, #tpu.memory_space<vmem>>, %arg8: memref<32x128xf32, #tpu.memory_space<vmem>>, %arg9: memref<4x16x128xf32, #tpu.memory_space<vmem>>, %arg10: memref<32x128xf32, #tpu.memory_space<vmem>>, %arg11: memref<32x128xf32, #tpu.memory_space<vmem>>) attributes {dimension_semantics = [#tpu.dimension_semantics<parallel>, #tpu.dimension_semantics<parallel>, #tpu.dimension_semantics<arbitrary>], iteration_bounds = array<i64: 2, 2, 2>, scalar_prefetch = 0 : i64, scratch_operands = 4 : i64, tpu.core_type = #tpu.core_type<tc>, window_params = [{transform_indices = @transform_0, window_bounds = array<i64: 1, 1, 32, 128>}, {transform_indices = @transform_1, window_bounds = array<i64: 1, 1, 4, 16, 16>}, {pipeline_mode = #tpu.pipeline_mode<synchronous>, transform_indices = @transform_2, window_bounds = array<i64: 32, 32>}, {pipeline_mode = #tpu.pipeline_mode<synchronous>, transform_indices = @transform_3, window_bounds = array<i64: 32, 1>}, {transform_indices = @transform_4, window_bounds = array<i64: 1, 1, 32, 128>}]} {
    %c0_i32 = arith.constant 0 : i32
    %0 = arith.cmpi eq, %arg2, %c0_i32 : i32
    %1 = arith.extui %0 : i1 to i32
    %c0_i32_0 = arith.constant 0 : i32
    %2 = arith.cmpi ne, %1, %c0_i32_0 : i32
    scf.if %2 {
      %cst_114 = arith.constant 0.000000e+00 : f32
      %140 = vector.broadcast %cst_114 : f32 to vector<32x128xf32>
      %c0_115 = arith.constant 0 : index
      %c0_116 = arith.constant 0 : index
      %141 = vector.load %arg8[%c0_115, %c0_116] : memref<32x128xf32, #tpu.memory_space<vmem>>, vector<32x128xf32>
      tpu.vector_store %arg8[%c0_115, %c0_116], %140 {strides = array<i32>} : memref<32x128xf32, #tpu.memory_space<vmem>>, vector<32x128xf32>,
      %cst_117 = arith.constant 0.000000e+00 : f32
      %142 = vector.broadcast %cst_117 : f32 to vector<4x16x128xf32>
      %c0_118 = arith.constant 0 : index
      %c0_119 = arith.constant 0 : index
      %c0_120 = arith.constant 0 : index
      %143 = vector.load %arg9[%c0_118, %c0_119, %c0_120] : memref<4x16x128xf32, #tpu.memory_space<vmem>>, vector<4x16x128xf32>
      tpu.vector_store %arg9[%c0_118, %c0_119, %c0_120], %142 {strides = array<i32>} : memref<4x16x128xf32, #tpu.memory_space<vmem>>, vector<4x16x128xf32>,
      %cst_121 = arith.constant 0.000000e+00 : f32
      %144 = vector.broadcast %cst_121 : f32 to vector<32x128xf32>
      %c0_122 = arith.constant 0 : index
      %c0_123 = arith.constant 0 : index
      %145 = vector.load %arg11[%c0_122, %c0_123] : memref<32x128xf32, #tpu.memory_space<vmem>>, vector<32x128xf32>
      tpu.vector_store %arg11[%c0_122, %c0_123], %144 {strides = array<i32>} : memref<32x128xf32, #tpu.memory_space<vmem>>, vector<32x128xf32>,
    } else {
    }
    %c0 = arith.constant 0 : index
    %c0_1 = arith.constant 0 : index
    %c0_2 = arith.constant 0 : index
    %c0_3 = arith.constant 0 : index
    %3 = vector.load %arg3[%c0, %c0_1, %c0_2, %c0_3] : memref<1x1x32x128xf32, #tpu.memory_space<vmem>>, vector<1x1x32x128xf32>
    %4 = vector.shape_cast %3 : vector<1x1x32x128xf32> to vector<32x128xf32>
    %c0_4 = arith.constant 0 : index
    %c0_5 = arith.constant 0 : index
    %5 = vector.load %arg8[%c0_4, %c0_5] : memref<32x128xf32, #tpu.memory_space<vmem>>, vector<32x128xf32>
    %6 = arith.subf %4, %5 : vector<32x128xf32>
    %cst = arith.constant 5.000000e-01 : f32
    %7 = vector.broadcast %cst : f32 to vector<32x128xf32>
    %8 = arith.mulf %6, %7 : vector<32x128xf32>
    %9 = arith.addf %5, %8 : vector<32x128xf32>
    %cst_6 = arith.constant 1.000000e+00 : f32
    %10 = vector.broadcast %cst_6 : f32 to vector<32x128xf32>
    %11 = arith.cmpf oge, %9, %10 : vector<32x128xf32>
    %cst_7 = arith.constant 0.000000e+00 : f32
    %12 = vector.broadcast %cst_7 : f32 to vector<32x128xf32>
    %13 = arith.select %11, %12, %9 : vector<32x128xi1>, vector<32x128xf32>
    %c0_8 = arith.constant 0 : index
    %c0_9 = arith.constant 0 : index
    %14 = vector.load %arg8[%c0_8, %c0_9] : memref<32x128xf32, #tpu.memory_space<vmem>>, vector<32x128xf32>
    tpu.vector_store %arg8[%c0_8, %c0_9], %13 {strides = array<i32>} : memref<32x128xf32, #tpu.memory_space<vmem>>, vector<32x128xf32>,
    %15 = arith.extui %11 : vector<32x128xi1> to vector<32x128xi32>
    %16 = arith.sitofp %15 : vector<32x128xi32> to vector<32x128xf32>
    %c0_10 = arith.constant 0 : index
    %c0_11 = arith.constant 0 : index
    %c0_12 = arith.constant 0 : index
    %c0_13 = arith.constant 0 : index
    %c0_14 = arith.constant 0 : index
    %17 = vector.load %arg4[%c0_10, %c0_11, %c0_12, %c0_13, %c0_14] : memref<1x1x4x16x16xbf16, #tpu.memory_space<vmem>>, vector<1x1x1x8x16xbf16>
    %18 = vector.shape_cast %17 : vector<1x1x1x8x16xbf16> to vector<8x16xbf16>
    %c0_15 = arith.constant 0 : index
    %c0_16 = arith.constant 0 : index
    %c0_17 = arith.constant 0 : index
    %c8 = arith.constant 8 : index
    %c0_18 = arith.constant 0 : index
    %19 = vector.load %arg4[%c0_15, %c0_16, %c0_17, %c8, %c0_18] : memref<1x1x4x16x16xbf16, #tpu.memory_space<vmem>>, vector<1x1x1x8x16xbf16>
    %20 = vector.shape_cast %19 : vector<1x1x1x8x16xbf16> to vector<8x16xbf16>
    %21 = vector.extract_strided_slice %16 {offsets = [0, 0], sizes = [8, 128], strides = [1, 1]} : vector<32x128xf32> to vector<8x128xf32>
    %22 = arith.truncf %21 : vector<8x128xf32> to vector<8x128xbf16>
    %cst_19 = arith.constant dense<0.000000e+00> : vector<16x128xf32>
    %23 = tpu.matmul %18, %22, %cst_19 {dimension_numbers = #tpu.dot_dimension_numbers<[0], [0], [1], [1], [0, 1, 1, 1], [], []>} : vector<8x16xbf16>, vector<8x128xbf16>, vector<16x128xf32> -> vector<16x128xf32>
    %c0_20 = arith.constant 0 : index
    %c0_21 = arith.constant 0 : index
    %c0_22 = arith.constant 0 : index
    %24 = vector.load %arg9[%c0_20, %c0_21, %c0_22] : memref<4x16x128xf32, #tpu.memory_space<vmem>>, vector<1x16x128xf32>
    %25 = vector.shape_cast %24 : vector<1x16x128xf32> to vector<16x128xf32>
    %26 = arith.subf %23, %25 : vector<16x128xf32>
    %cst_23 = arith.constant 5.000000e-01 : f32
    %27 = vector.broadcast %cst_23 : f32 to vector<16x128xf32>
    %28 = arith.mulf %26, %27 : vector<16x128xf32>
    %29 = arith.addf %25, %28 : vector<16x128xf32>
    %cst_24 = arith.constant 1.000000e+00 : f32
    %30 = vector.broadcast %cst_24 : f32 to vector<16x128xf32>
    %31 = arith.cmpf oge, %29, %30 : vector<16x128xf32>
    %cst_25 = arith.constant 0.000000e+00 : f32
    %32 = vector.broadcast %cst_25 : f32 to vector<16x128xf32>
    %33 = arith.select %31, %32, %29 : vector<16x128xi1>, vector<16x128xf32>
    %c0_26 = arith.constant 0 : index
    %c0_27 = arith.constant 0 : index
    %c0_28 = arith.constant 0 : index
    %34 = vector.load %arg9[%c0_26, %c0_27, %c0_28] : memref<4x16x128xf32, #tpu.memory_space<vmem>>, vector<1x16x128xf32>
    %35 = vector.shape_cast %34 : vector<1x16x128xf32> to vector<16x128xf32>
    %36 = vector.shape_cast %33 : vector<16x128xf32> to vector<1x16x128xf32>
    tpu.vector_store %arg9[%c0_26, %c0_27, %c0_28], %36 {strides = array<i32>} : memref<4x16x128xf32, #tpu.memory_space<vmem>>, vector<1x16x128xf32>,
    %37 = arith.extui %31 : vector<16x128xi1> to vector<16x128xi32>
    %38 = arith.sitofp %37 : vector<16x128xi32> to vector<16x128xf32>
    %39 = arith.truncf %38 : vector<16x128xf32> to vector<16x128xbf16>
    %cst_29 = arith.constant dense<0.000000e+00> : vector<8x128xf32>
    %40 = tpu.matmul %20, %39, %cst_29 {dimension_numbers = #tpu.dot_dimension_numbers<[1], [0], [0], [1], [0, 0, 1, 1], [], []>} : vector<8x16xbf16>, vector<16x128xbf16>, vector<8x128xf32> -> vector<8x128xf32>
    %c0_30 = arith.constant 0 : index
    %c0_31 = arith.constant 0 : index
    %41 = vector.load %arg10[%c0_30, %c0_31] : memref<32x128xf32, #tpu.memory_space<vmem>>, vector<8x128xf32>
    tpu.vector_store %arg10[%c0_30, %c0_31], %40 {strides = array<i32>} : memref<32x128xf32, #tpu.memory_space<vmem>>, vector<8x128xf32>,
    %c0_32 = arith.constant 0 : index
    %c0_33 = arith.constant 0 : index
    %c1 = arith.constant 1 : index
    %c0_34 = arith.constant 0 : index
    %c0_35 = arith.constant 0 : index
    %42 = vector.load %arg4[%c0_32, %c0_33, %c1, %c0_34, %c0_35] : memref<1x1x4x16x16xbf16, #tpu.memory_space<vmem>>, vector<1x1x1x8x16xbf16>
    %43 = vector.shape_cast %42 : vector<1x1x1x8x16xbf16> to vector<8x16xbf16>
    %c0_36 = arith.constant 0 : index
    %c0_37 = arith.constant 0 : index
    %c1_38 = arith.constant 1 : index
    %c8_39 = arith.constant 8 : index
    %c0_40 = arith.constant 0 : index
    %44 = vector.load %arg4[%c0_36, %c0_37, %c1_38, %c8_39, %c0_40] : memref<1x1x4x16x16xbf16, #tpu.memory_space<vmem>>, vector<1x1x1x8x16xbf16>
    %45 = vector.shape_cast %44 : vector<1x1x1x8x16xbf16> to vector<8x16xbf16>
    %46 = vector.extract_strided_slice %16 {offsets = [8, 0], sizes = [8, 128], strides = [1, 1]} : vector<32x128xf32> to vector<8x128xf32>
    %47 = arith.truncf %46 : vector<8x128xf32> to vector<8x128xbf16>
    %cst_41 = arith.constant dense<0.000000e+00> : vector<16x128xf32>
    %48 = tpu.matmul %43, %47, %cst_41 {dimension_numbers = #tpu.dot_dimension_numbers<[0], [0], [1], [1], [0, 1, 1, 1], [], []>} : vector<8x16xbf16>, vector<8x128xbf16>, vector<16x128xf32> -> vector<16x128xf32>
    %c1_42 = arith.constant 1 : index
    %c0_43 = arith.constant 0 : index
    %c0_44 = arith.constant 0 : index
    %49 = vector.load %arg9[%c1_42, %c0_43, %c0_44] : memref<4x16x128xf32, #tpu.memory_space<vmem>>, vector<1x16x128xf32>
    %50 = vector.shape_cast %49 : vector<1x16x128xf32> to vector<16x128xf32>
    %51 = arith.subf %48, %50 : vector<16x128xf32>
    %cst_45 = arith.constant 5.000000e-01 : f32
    %52 = vector.broadcast %cst_45 : f32 to vector<16x128xf32>
    %53 = arith.mulf %51, %52 : vector<16x128xf32>
    %54 = arith.addf %50, %53 : vector<16x128xf32>
    %cst_46 = arith.constant 1.000000e+00 : f32
    %55 = vector.broadcast %cst_46 : f32 to vector<16x128xf32>
    %56 = arith.cmpf oge, %54, %55 : vector<16x128xf32>
    %cst_47 = arith.constant 0.000000e+00 : f32
    %57 = vector.broadcast %cst_47 : f32 to vector<16x128xf32>
    %58 = arith.select %56, %57, %54 : vector<16x128xi1>, vector<16x128xf32>
    %c1_48 = arith.constant 1 : index
    %c0_49 = arith.constant 0 : index
    %c0_50 = arith.constant 0 : index
    %59 = vector.load %arg9[%c1_48, %c0_49, %c0_50] : memref<4x16x128xf32, #tpu.memory_space<vmem>>, vector<1x16x128xf32>
    %60 = vector.shape_cast %59 : vector<1x16x128xf32> to vector<16x128xf32>
    %61 = vector.shape_cast %58 : vector<16x128xf32> to vector<1x16x128xf32>
    tpu.vector_store %arg9[%c1_48, %c0_49, %c0_50], %61 {strides = array<i32>} : memref<4x16x128xf32, #tpu.memory_space<vmem>>, vector<1x16x128xf32>,
    %62 = arith.extui %56 : vector<16x128xi1> to vector<16x128xi32>
    %63 = arith.sitofp %62 : vector<16x128xi32> to vector<16x128xf32>
    %64 = arith.truncf %63 : vector<16x128xf32> to vector<16x128xbf16>
    %cst_51 = arith.constant dense<0.000000e+00> : vector<8x128xf32>
    %65 = tpu.matmul %45, %64, %cst_51 {dimension_numbers = #tpu.dot_dimension_numbers<[1], [0], [0], [1], [0, 0, 1, 1], [], []>} : vector<8x16xbf16>, vector<16x128xbf16>, vector<8x128xf32> -> vector<8x128xf32>
    %c8_52 = arith.constant 8 : index
    %c0_53 = arith.constant 0 : index
    %66 = vector.load %arg10[%c8_52, %c0_53] : memref<32x128xf32, #tpu.memory_space<vmem>>, vector<8x128xf32>
    tpu.vector_store %arg10[%c8_52, %c0_53], %65 {strides = array<i32>} : memref<32x128xf32, #tpu.memory_space<vmem>>, vector<8x128xf32>,
    %c0_54 = arith.constant 0 : index
    %c0_55 = arith.constant 0 : index
    %c2 = arith.constant 2 : index
    %c0_56 = arith.constant 0 : index
    %c0_57 = arith.constant 0 : index
    %67 = vector.load %arg4[%c0_54, %c0_55, %c2, %c0_56, %c0_57] : memref<1x1x4x16x16xbf16, #tpu.memory_space<vmem>>, vector<1x1x1x8x16xbf16>
    %68 = vector.shape_cast %67 : vector<1x1x1x8x16xbf16> to vector<8x16xbf16>
    %c0_58 = arith.constant 0 : index
    %c0_59 = arith.constant 0 : index
    %c2_60 = arith.constant 2 : index
    %c8_61 = arith.constant 8 : index
    %c0_62 = arith.constant 0 : index
    %69 = vector.load %arg4[%c0_58, %c0_59, %c2_60, %c8_61, %c0_62] : memref<1x1x4x16x16xbf16, #tpu.memory_space<vmem>>, vector<1x1x1x8x16xbf16>
    %70 = vector.shape_cast %69 : vector<1x1x1x8x16xbf16> to vector<8x16xbf16>
    %71 = vector.extract_strided_slice %16 {offsets = [16, 0], sizes = [8, 128], strides = [1, 1]} : vector<32x128xf32> to vector<8x128xf32>
    %72 = arith.truncf %71 : vector<8x128xf32> to vector<8x128xbf16>
    %cst_63 = arith.constant dense<0.000000e+00> : vector<16x128xf32>
    %73 = tpu.matmul %68, %72, %cst_63 {dimension_numbers = #tpu.dot_dimension_numbers<[0], [0], [1], [1], [0, 1, 1, 1], [], []>} : vector<8x16xbf16>, vector<8x128xbf16>, vector<16x128xf32> -> vector<16x128xf32>
    %c2_64 = arith.constant 2 : index
    %c0_65 = arith.constant 0 : index
    %c0_66 = arith.constant 0 : index
    %74 = vector.load %arg9[%c2_64, %c0_65, %c0_66] : memref<4x16x128xf32, #tpu.memory_space<vmem>>, vector<1x16x128xf32>
    %75 = vector.shape_cast %74 : vector<1x16x128xf32> to vector<16x128xf32>
    %76 = arith.subf %73, %75 : vector<16x128xf32>
    %cst_67 = arith.constant 5.000000e-01 : f32
    %77 = vector.broadcast %cst_67 : f32 to vector<16x128xf32>
    %78 = arith.mulf %76, %77 : vector<16x128xf32>
    %79 = arith.addf %75, %78 : vector<16x128xf32>
    %cst_68 = arith.constant 1.000000e+00 : f32
    %80 = vector.broadcast %cst_68 : f32 to vector<16x128xf32>
    %81 = arith.cmpf oge, %79, %80 : vector<16x128xf32>
    %cst_69 = arith.constant 0.000000e+00 : f32
    %82 = vector.broadcast %cst_69 : f32 to vector<16x128xf32>
    %83 = arith.select %81, %82, %79 : vector<16x128xi1>, vector<16x128xf32>
    %c2_70 = arith.constant 2 : index
    %c0_71 = arith.constant 0 : index
    %c0_72 = arith.constant 0 : index
    %84 = vector.load %arg9[%c2_70, %c0_71, %c0_72] : memref<4x16x128xf32, #tpu.memory_space<vmem>>, vector<1x16x128xf32>
    %85 = vector.shape_cast %84 : vector<1x16x128xf32> to vector<16x128xf32>
    %86 = vector.shape_cast %83 : vector<16x128xf32> to vector<1x16x128xf32>
    tpu.vector_store %arg9[%c2_70, %c0_71, %c0_72], %86 {strides = array<i32>} : memref<4x16x128xf32, #tpu.memory_space<vmem>>, vector<1x16x128xf32>,
    %87 = arith.extui %81 : vector<16x128xi1> to vector<16x128xi32>
    %88 = arith.sitofp %87 : vector<16x128xi32> to vector<16x128xf32>
    %89 = arith.truncf %88 : vector<16x128xf32> to vector<16x128xbf16>
    %cst_73 = arith.constant dense<0.000000e+00> : vector<8x128xf32>
    %90 = tpu.matmul %70, %89, %cst_73 {dimension_numbers = #tpu.dot_dimension_numbers<[1], [0], [0], [1], [0, 0, 1, 1], [], []>} : vector<8x16xbf16>, vector<16x128xbf16>, vector<8x128xf32> -> vector<8x128xf32>
    %c16 = arith.constant 16 : index
    %c0_74 = arith.constant 0 : index
    %91 = vector.load %arg10[%c16, %c0_74] : memref<32x128xf32, #tpu.memory_space<vmem>>, vector<8x128xf32>
    tpu.vector_store %arg10[%c16, %c0_74], %90 {strides = array<i32>} : memref<32x128xf32, #tpu.memory_space<vmem>>, vector<8x128xf32>,
    %c0_75 = arith.constant 0 : index
    %c0_76 = arith.constant 0 : index
    %c3 = arith.constant 3 : index
    %c0_77 = arith.constant 0 : index
    %c0_78 = arith.constant 0 : index
    %92 = vector.load %arg4[%c0_75, %c0_76, %c3, %c0_77, %c0_78] : memref<1x1x4x16x16xbf16, #tpu.memory_space<vmem>>, vector<1x1x1x8x16xbf16>
    %93 = vector.shape_cast %92 : vector<1x1x1x8x16xbf16> to vector<8x16xbf16>
    %c0_79 = arith.constant 0 : index
    %c0_80 = arith.constant 0 : index
    %c3_81 = arith.constant 3 : index
    %c8_82 = arith.constant 8 : index
    %c0_83 = arith.constant 0 : index
    %94 = vector.load %arg4[%c0_79, %c0_80, %c3_81, %c8_82, %c0_83] : memref<1x1x4x16x16xbf16, #tpu.memory_space<vmem>>, vector<1x1x1x8x16xbf16>
    %95 = vector.shape_cast %94 : vector<1x1x1x8x16xbf16> to vector<8x16xbf16>
    %96 = vector.extract_strided_slice %16 {offsets = [24, 0], sizes = [8, 128], strides = [1, 1]} : vector<32x128xf32> to vector<8x128xf32>
    %97 = arith.truncf %96 : vector<8x128xf32> to vector<8x128xbf16>
    %cst_84 = arith.constant dense<0.000000e+00> : vector<16x128xf32>
    %98 = tpu.matmul %93, %97, %cst_84 {dimension_numbers = #tpu.dot_dimension_numbers<[0], [0], [1], [1], [0, 1, 1, 1], [], []>} : vector<8x16xbf16>, vector<8x128xbf16>, vector<16x128xf32> -> vector<16x128xf32>
    %c3_85 = arith.constant 3 : index
    %c0_86 = arith.constant 0 : index
    %c0_87 = arith.constant 0 : index
    %99 = vector.load %arg9[%c3_85, %c0_86, %c0_87] : memref<4x16x128xf32, #tpu.memory_space<vmem>>, vector<1x16x128xf32>
    %100 = vector.shape_cast %99 : vector<1x16x128xf32> to vector<16x128xf32>
    %101 = arith.subf %98, %100 : vector<16x128xf32>
    %cst_88 = arith.constant 5.000000e-01 : f32
    %102 = vector.broadcast %cst_88 : f32 to vector<16x128xf32>
    %103 = arith.mulf %101, %102 : vector<16x128xf32>
    %104 = arith.addf %100, %103 : vector<16x128xf32>
    %cst_89 = arith.constant 1.000000e+00 : f32
    %105 = vector.broadcast %cst_89 : f32 to vector<16x128xf32>
    %106 = arith.cmpf oge, %104, %105 : vector<16x128xf32>
    %cst_90 = arith.constant 0.000000e+00 : f32
    %107 = vector.broadcast %cst_90 : f32 to vector<16x128xf32>
    %108 = arith.select %106, %107, %104 : vector<16x128xi1>, vector<16x128xf32>
    %c3_91 = arith.constant 3 : index
    %c0_92 = arith.constant 0 : index
    %c0_93 = arith.constant 0 : index
    %109 = vector.load %arg9[%c3_91, %c0_92, %c0_93] : memref<4x16x128xf32, #tpu.memory_space<vmem>>, vector<1x16x128xf32>
    %110 = vector.shape_cast %109 : vector<1x16x128xf32> to vector<16x128xf32>
    %111 = vector.shape_cast %108 : vector<16x128xf32> to vector<1x16x128xf32>
    tpu.vector_store %arg9[%c3_91, %c0_92, %c0_93], %111 {strides = array<i32>} : memref<4x16x128xf32, #tpu.memory_space<vmem>>, vector<1x16x128xf32>,
    %112 = arith.extui %106 : vector<16x128xi1> to vector<16x128xi32>
    %113 = arith.sitofp %112 : vector<16x128xi32> to vector<16x128xf32>
    %114 = arith.truncf %113 : vector<16x128xf32> to vector<16x128xbf16>
    %cst_94 = arith.constant dense<0.000000e+00> : vector<8x128xf32>
    %115 = tpu.matmul %95, %114, %cst_94 {dimension_numbers = #tpu.dot_dimension_numbers<[1], [0], [0], [1], [0, 0, 1, 1], [], []>} : vector<8x16xbf16>, vector<16x128xbf16>, vector<8x128xf32> -> vector<8x128xf32>
    %c24 = arith.constant 24 : index
    %c0_95 = arith.constant 0 : index
    %116 = vector.load %arg10[%c24, %c0_95] : memref<32x128xf32, #tpu.memory_space<vmem>>, vector<8x128xf32>
    tpu.vector_store %arg10[%c24, %c0_95], %115 {strides = array<i32>} : memref<32x128xf32, #tpu.memory_space<vmem>>, vector<8x128xf32>,
    %c0_96 = arith.constant 0 : index
    %c0_97 = arith.constant 0 : index
    %117 = vector.load %arg10[%c0_96, %c0_97] : memref<32x128xf32, #tpu.memory_space<vmem>>, vector<32x128xf32>
    %c0_98 = arith.constant 0 : index
    %c0_99 = arith.constant 0 : index
    %118 = vector.load %arg11[%c0_98, %c0_99] : memref<32x128xf32, #tpu.memory_space<vmem>>, vector<32x128xf32>
    %119 = arith.subf %117, %118 : vector<32x128xf32>
    %cst_100 = arith.constant 5.000000e-01 : f32
    %120 = vector.broadcast %cst_100 : f32 to vector<32x128xf32>
    %121 = arith.mulf %119, %120 : vector<32x128xf32>
    %122 = arith.addf %118, %121 : vector<32x128xf32>
    %cst_101 = arith.constant 1.000000e+00 : f32
    %123 = vector.broadcast %cst_101 : f32 to vector<32x128xf32>
    %124 = arith.cmpf oge, %122, %123 : vector<32x128xf32>
    %cst_102 = arith.constant 0.000000e+00 : f32
    %125 = vector.broadcast %cst_102 : f32 to vector<32x128xf32>
    %126 = arith.select %124, %125, %122 : vector<32x128xi1>, vector<32x128xf32>
    %c0_103 = arith.constant 0 : index
    %c0_104 = arith.constant 0 : index
    %127 = vector.load %arg11[%c0_103, %c0_104] : memref<32x128xf32, #tpu.memory_space<vmem>>, vector<32x128xf32>
    tpu.vector_store %arg11[%c0_103, %c0_104], %126 {strides = array<i32>} : memref<32x128xf32, #tpu.memory_space<vmem>>, vector<32x128xf32>,
    %128 = arith.extui %124 : vector<32x128xi1> to vector<32x128xi32>
    %129 = arith.sitofp %128 : vector<32x128xi32> to vector<32x128xf32>
    %130 = arith.truncf %129 : vector<32x128xf32> to vector<32x128xbf16>
    %c0_105 = arith.constant 0 : index
    %c0_106 = arith.constant 0 : index
    %131 = vector.load %arg5[%c0_105, %c0_106] : memref<32x32xbf16, #tpu.memory_space<vmem>>, vector<32x32xbf16>
    %cst_107 = arith.constant dense<0.000000e+00> : vector<32x128xf32>
    %132 = tpu.matmul %131, %130, %cst_107 {dimension_numbers = #tpu.dot_dimension_numbers<[1], [0], [0], [1], [0, 0, 1, 1], [], []>} : vector<32x32xbf16>, vector<32x128xbf16>, vector<32x128xf32> -> vector<32x128xf32>
    %c0_108 = arith.constant 0 : index
    %c0_109 = arith.constant 0 : index
    %133 = vector.load %arg6[%c0_108, %c0_109] : memref<32x1xf32, #tpu.memory_space<vmem>>, vector<32x1xf32>
    %134 = vector.broadcast %133 : vector<32x1xf32> to vector<32x128xf32>
    %135 = arith.addf %132, %134 : vector<32x128xf32>
    %136 = arith.addf %135, %4 : vector<32x128xf32>
    %c0_110 = arith.constant 0 : index
    %c0_111 = arith.constant 0 : index
    %c0_112 = arith.constant 0 : index
    %c0_113 = arith.constant 0 : index
    %137 = vector.load %arg7[%c0_110, %c0_111, %c0_112, %c0_113] : memref<1x1x32x128xf32, #tpu.memory_space<vmem>>, vector<1x1x32x128xf32>
    %138 = vector.shape_cast %137 : vector<1x1x32x128xf32> to vector<32x128xf32>
    %139 = vector.shape_cast %136 : vector<32x128xf32> to vector<1x1x32x128xf32>
    tpu.vector_store %arg7[%c0_110, %c0_111, %c0_112, %c0_113], %139 {strides = array<i32>} : memref<1x1x32x128xf32, #tpu.memory_space<vmem>>, vector<1x1x32x128xf32>,
    return
  }
  func.func @transform_0(%arg0: i32, %arg1: i32, %arg2: i32) -> (i32, i32, i32, i32) {
    %c0_i32 = arith.constant 0 : i32
    %c0_i32_0 = arith.constant 0 : i32
    return %arg2, %arg0, %c0_i32, %arg1 : i32, i32, i32, i32
  }
  func.func @transform_1(%arg0: i32, %arg1: i32, %arg2: i32) -> (i32, i32, i32, i32, i32) {
    %c0_i32 = arith.constant 0 : i32
    %c0_i32_0 = arith.constant 0 : i32
    %c0_i32_1 = arith.constant 0 : i32
    %c0_i32_2 = arith.constant 0 : i32
    return %arg2, %arg0, %c0_i32, %c0_i32_0, %c0_i32_1 : i32, i32, i32, i32, i32
  }
  func.func @transform_2(%arg0: i32, %arg1: i32, %arg2: i32) -> (i32, i32) {
    %c0_i32 = arith.constant 0 : i32
    %c0_i32_0 = arith.constant 0 : i32
    %c0_i32_1 = arith.constant 0 : i32
    return %c0_i32, %c0_i32_0 : i32, i32
  }
  func.func @transform_3(%arg0: i32, %arg1: i32, %arg2: i32) -> (i32, i32) {
    %c0_i32 = arith.constant 0 : i32
    %c0_i32_0 = arith.constant 0 : i32
    %c0_i32_1 = arith.constant 0 : i32
    return %c0_i32, %c0_i32_0 : i32, i32
  }
  func.func @transform_4(%arg0: i32, %arg1: i32, %arg2: i32) -> (i32, i32, i32, i32) {
    %c0_i32 = arith.constant 0 : i32
    %c0_i32_0 = arith.constant 0 : i32
    return %arg2, %arg0, %c0_i32, %arg1 : i32, i32, i32, i32
  }
}

</mosaic_0001>

<llo_original>
// kernel: dssa_forward.3
$region0: #{dssa_forward.3}
  #allocation0 [shape = 'u32[]', space=smem, size = 0x4, offset = 0x4, fixed_abs, tag = 'smem constant byte address 0x4 - core index']
  #allocation1 [shape = 'u32[144,128]{1,0:T(1,128)}', space=vmem, size = 0x12000, scoped, tag = 'internal scratch']
  #allocation2 [shape = 'f32[32,128]{1,0:T(8,128)}', space=vmem, size = 0x4000, scoped, tag = 'scratch operand']
  %s0 = inlined_call_operand.vmem [shape: f32[2,64,256], index: 0, kind: input, shape index: {}]
  %s1 = inlined_call_operand.vmem [shape: bf16[2,64,256], index: 1, kind: output, shape index: {}]
  %s2 = sld [smem:[#allocation0]]
  $region116: #{dssa_forward.3} parent=0
    _
  %s4 = ssub.s32 1, %s2
  %s5 = scalar_select 0, %s4, %s2
  $region1: #{dssa_forward.3} parent=0
    #allocation3 [shape = 'u8[32768]{0}', space=vmem, size = 0x8000, scoped, tag = 'input window, operand 0']
    #allocation4 [shape = 'u8[16384]{0}', space=vmem, size = 0x4000, scoped, tag = 'output window, operand 0']
    loop: start=0, step=1, limit=10
    $region2: #{dssa_forward.3} parent=1 // loop_pre_header
      _
    $region3: #{dssa_forward.3} parent=1 // loop_header
      %s7 = sphi 0, %s11
      %p8 = scmp.ge.s32.totalorder %s7, 10
      %s14 = sphi 0, %s33
      %s15 = sphi 0, %s29
      %s16 = sphi 0, %s25
      %s17 = sphi 0, %s14
      %s18 = sphi 0, %s15
      %s19 = sphi 0, %s16
      %s20 = sphi 0, %s17
      %s21 = sphi 0, %s18
      %s22 = sphi 0, %s19
      %s40 = sphi 0, %s42
      %s43 = sphi 0, %s40
      %s44 = sphi 0, %s43
      %s60 = sphi 0, %s44
      %s70 = sphi 0, %s72
      %s73 = sphi 0, %s70
      %s74 = sphi 0, %s73
      %s90 = sphi 0, %s74
    $region4: #{dssa_forward.3} parent=1 // loop_header_branch
      %10 = sbr.rel (%p8) target = $region8
    $region5: #{dssa_forward.3} parent=1 // loop_body
      %s12 = ssub.s32 %s7, 1
      %s13 = ssub.s32 %s7, 2
      %s23 = sadd.s32 1, %s16
      %p24 = scmp.ge.s32.totalorder %s23, 2
      %s25 = scalar_select %p24, 0, %s23
      %s26 = sadd.s32 1, %s15
      %s27 = scalar_select %p24, %s26, %s15
      %p28 = scmp.ge.s32.totalorder %s27, 2
      %s29 = scalar_select %p28, 0, %s27
      %s30 = sadd.s32 1, %s14
      %s31 = scalar_select %p28, %s30, %s14
      %p32 = scmp.ge.s32.totalorder %s31, 2
      %s33 = scalar_select %p32, 0, %s31
      %s34 = ssub.s32 %s16, %s25
      %s35 = ssub.s32 %s14, %s33
      %s36 = sor.u32 %s34, %s35
      %s37 = ssub.s32 %s15, %s29
      %s38 = sor.u32 %s36, %s37
      %p39 = scmp.eq.s32.totalorder %s38, 0
      %s41 = sadd.s32 %s40, 1
      %s42 = scalar_select %p39, %s40, %s41
      %p45 = pneg %p39
      %p46 = scmp.eq.s32.totalorder %s7, 7
      %p47 = por %p45, %p46
      %p48 = scmp.ne.s32.totalorder %s40, %s43
      %p49 = scmp.eq.s32.totalorder %s7, 0
      %p50 = por %p48, %p49
      %p51 = scmp.ne.s32.totalorder %s40, %s43
      %p52 = scmp.eq.s32.totalorder %s12, 7
      %p53 = por %p51, %p52
      %p54 = scmp.ne.s32.totalorder %s43, %s44
      %p55 = scmp.eq.s32.totalorder %s12, 0
      %p56 = por %p54, %p55
      %p57 = scmp.ne.s32.totalorder %s43, %s44
      %p58 = scmp.eq.s32.totalorder %s13, 7
      %p59 = por %p57, %p58
      %p61 = scmp.ne.s32.totalorder %s44, %s60
      %p62 = scmp.eq.s32.totalorder %s13, 0
      %p63 = por %p61, %p62
      %s64 = ssub.s32 %s16, %s25
      %s65 = ssub.s32 %s14, %s33
      %s66 = sor.u32 %s64, %s65
      %s67 = ssub.s32 %s15, %s29
      %s68 = sor.u32 %s66, %s67
      %p69 = scmp.eq.s32.totalorder %s68, 0
      %s71 = sadd.s32 %s70, 1
      %s72 = scalar_select %p69, %s70, %s71
      %p75 = pneg %p69
      %p76 = scmp.eq.s32.totalorder %s7, 7
      %p77 = por %p75, %p76
      %p78 = scmp.ne.s32.totalorder %s70, %s73
      %p79 = scmp.eq.s32.totalorder %s7, 0
      %p80 = por %p78, %p79
      %p81 = scmp.ne.s32.totalorder %s70, %s73
      %p82 = scmp.eq.s32.totalorder %s12, 7
      %p83 = por %p81, %p82
      %p84 = scmp.ne.s32.totalorder %s73, %s74
      %p85 = scmp.eq.s32.totalorder %s12, 0
      %p86 = por %p84, %p85
      %p87 = scmp.ne.s32.totalorder %s73, %s74
      %p88 = scmp.eq.s32.totalorder %s13, 7
      %p89 = por %p87, %p88
      %p91 = scmp.ne.s32.totalorder %s74, %s90
      %p92 = scmp.eq.s32.totalorder %s13, 0
      %p93 = por %p91, %p92
      %p94 = scmp.le.s32.totalorder 1, %s7
      %p95 = scmp.lt.s32.totalorder %s7, 9
      %p96 = pnand %p94, %p95
      %p97 = pneg %p96
      // Predicated region
      $region9: #{dssa_forward.3} parent=5 // pred_check
        _
      $region10: #{dssa_forward.3} parent=5 // pred_check_branch
        %99 = sbr.rel (%p96) target = $region12
      $region11: #{dssa_forward.3} parent=5 // pred_region
        %s100 = ssub.s32 %s7, 1
      $region12: #{dssa_forward.3} parent=5 // pred_fallthru
        _
      %p101 = scmp.lt.s32.totalorder %s7, 8
      // Predicated region
      $region13: #{dssa_forward.3} parent=5 // pred_check
        %p102 = pneg %p101
      $region14: #{dssa_forward.3} parent=5 // pred_check_branch
        %104 = sbr.rel (%p102) target = $region16
      $region15: #{dssa_forward.3} parent=5 // pred_region
        // Predicated region
        $region17: #{dssa_forward.3} parent=15 // pred_check
          %p105 = pneg %p50
        $region18: #{dssa_forward.3} parent=15 // pred_check_branch
          %107 = sbr.rel (%p105) target = $region20
        $region19: #{dssa_forward.3} parent=15 // pred_region
          %s108 = sand.u32 %s40, 1
          %s109 = sand.u32 %s40, 1
          %s110 = smul.addr %s109, 32
          %s111 = scalar_lea.vmem [#allocation3], %s110
          %s112 = smul.u32 4, %s14
          %s113 = smul.addr %s112, 2
          %s114 = sadd.s32 %s15, %s113
          %s115 = smul.addr %s16, 16
          %s116 = sadd.s32 %s114, %s115
          %s117 = smul.addr %s116, 8
          %s118 = scalar_lea.vmem %s0, %s117
          // Predicated region
          $region21: #{dssa_forward.3} parent=19 // pred_check
            _
          $region22: #{dssa_forward.3} parent=19 // pred_check_branch
            %120 = sbr.rel (0) target = $region24
          $region23: #{dssa_forward.3} parent=19 // pred_region
            // Predicated region
            $region25: #{dssa_forward.3} parent=23 // pred_check
              _
            $region26: #{dssa_forward.3} parent=23 // pred_check_branch
              %122 = sbr.rel (0) target = $region28
            $region27: #{dssa_forward.3} parent=23 // pred_region
              // Predicated region
              $region40: #{dssa_forward.3} parent=27 // pred_check
                _
              $region41: #{dssa_forward.3} parent=27 // pred_check_branch
                %144 = sbr.rel (0) target = $region43
              $region42: #{dssa_forward.3} parent=27 // pred_region
                loop: start=0, step=1, limit=1
                $region44: #{dssa_forward.3} parent=42 // loop_pre_header
                  _
                $region45: #{dssa_forward.3} parent=42 // loop_header
                  %s146 = sphi 0, %s150
                  %p147 = scmp.ge.s32.totalorder %s146, 1
                  %s151 = sphi %s118, %s118
                  %s152 = sphi %s111, %s111
                $region46: #{dssa_forward.3} parent=42 // loop_header_branch
                  %149 = sbr.rel (%p147) target = $region50
                $region47: #{dssa_forward.3} parent=42 // loop_body
                  %v153 = vld [vmem:[%s151] sm:$0xff]
                  %154 = vst [vmem:[%s152] sm:$0xff] %v153
                  %v155 = vld [vmem:[%s151 + $0x10] sm:$0xff]
                  %156 = vst [vmem:[%s152 + $0x8] sm:$0xff] %v155
                  %v157 = vld [vmem:[%s151 + $0x20] sm:$0xff]
                  %158 = vst [vmem:[%s152 + $0x10] sm:$0xff] %v157
                  %v159 = vld [vmem:[%s151 + $0x30] sm:$0xff]
                  %160 = vst [vmem:[%s152 + $0x18] sm:$0xff] %v159
                $region48: #{dssa_forward.3} parent=42 // loop_footer
                  %s150 = sadd.s32 1, %s146
                $region49: #{dssa_forward.3} parent=42 // loop_footer_branch
                  %145 = sbr.rel target = $region45
                $region50: #{dssa_forward.3} parent=42 // loop_exit
                  _
              $region43: #{dssa_forward.3} parent=27 // pred_fallthru
                _
              // Predicated region
              $region51: #{dssa_forward.3} parent=27 // pred_check
                _
              $region52: #{dssa_forward.3} parent=27 // pred_check_branch
                %162 = sbr.rel target = $region54
              $region53: #{dssa_forward.3} parent=27 // pred_region
                _
              $region54: #{dssa_forward.3} parent=27 // pred_fallthru
                _
            $region28: #{dssa_forward.3} parent=23 // pred_fallthru
              _
            // Predicated region
            $region29: #{dssa_forward.3} parent=23 // pred_check
              _
            $region30: #{dssa_forward.3} parent=23 // pred_check_branch
              %124 = sbr.rel target = $region32
            $region31: #{dssa_forward.3} parent=23 // pred_region
              %s126 = ssub.s32 256, 1
              loop: start=0, step=1, limit=1
              $region33: #{dssa_forward.3} parent=31 // loop_pre_header
                _
              $region34: #{dssa_forward.3} parent=31 // loop_header
                %s128 = sphi 0, %s132
                %p129 = scmp.ge.s32.totalorder %s128, 1
                %s133 = sphi %s118, %s118
                %s134 = sphi %s111, %s111
              $region35: #{dssa_forward.3} parent=31 // loop_header_branch
                %131 = sbr.rel (%p129) target = $region39
              $region36: #{dssa_forward.3} parent=31 // loop_body
                %v135 = vld [vmem:[%s133] sm:%s126]
                %136 = vst [vmem:[%s134] sm:%s126] %v135
                %v137 = vld [vmem:[%s133 + $0x10] sm:%s126]
                %138 = vst [vmem:[%s134 + $0x8] sm:%s126] %v137
                %v139 = vld [vmem:[%s133 + $0x20] sm:%s126]
                %140 = vst [vmem:[%s134 + $0x10] sm:%s126] %v139
                %v141 = vld [vmem:[%s133 + $0x30] sm:%s126]
                %142 = vst [vmem:[%s134 + $0x18] sm:%s126] %v141
              $region37: #{dssa_forward.3} parent=31 // loop_footer
                %s132 = sadd.s32 1, %s128
              $region38: #{dssa_forward.3} parent=31 // loop_footer_branch
                %127 = sbr.rel target = $region34
              $region39: #{dssa_forward.3} parent=31 // loop_exit
                _
            $region32: #{dssa_forward.3} parent=23 // pred_fallthru
              _
          $region24: #{dssa_forward.3} parent=19 // pred_fallthru
            _
          %163 = vnop
        $region20: #{dssa_forward.3} parent=15 // pred_fallthru
          _
      $region16: #{dssa_forward.3} parent=5 // pred_fallthru
        _
      %p164 = scmp.le.s32.totalorder 1, %s7
      %p165 = scmp.lt.s32.totalorder %s7, 9
      %p166 = pnand %p164, %p165
      %p167 = pneg %p166
      // Predicated region
      $region55: #{dssa_forward.3} parent=5 // pred_check
        _
      $region56: #{dssa_forward.3} parent=5 // pred_check_branch
        %169 = sbr.rel (%p166) target = $region58
      $region57: #{dssa_forward.3} parent=5 // pred_region
        %s170 = ssub.s32 %s7, 1
        %s171 = sand.u32 %s43, 1
        %s172 = sand.u32 %s43, 1
        %s173 = smul.addr %s172, 32
        %s174 = scalar_lea.vmem [#allocation3], %s173
        // Predicated region
        $region59: #{dssa_forward.3} parent=57 // pred_check
          %p175 = pneg %p56
        $region60: #{dssa_forward.3} parent=57 // pred_check_branch
          %177 = sbr.rel (%p175) target = $region62
        $region61: #{dssa_forward.3} parent=57 // pred_region
          _
        $region62: #{dssa_forward.3} parent=57 // pred_fallthru
          _
        %s178 = sand.u32 %s43, 1
        %s179 = sand.u32 %s43, 1
        %s180 = smul.addr %s179, 32
        %s181 = scalar_lea.vmem [#allocation3], %s180
        %p182 = pneg %p56
        %p183 = pneg %p53
        %p184 = pneg %p86
        %p185 = pneg %p83
        %s186 = sand.u32 %s73, 1
        %s187 = sand.u32 %s73, 1
        %s188 = smul.addr %s187, 16
        %s189 = scalar_lea.vmem [#allocation4], %s188
        %s190 = smul.u32 4, %s17
        %s191 = smul.u32 4, %s17
        %p192 = scmp.eq.s32.totalorder %s19, 0
        // Predicated region
        $region63: #{dssa_forward.3} parent=57 // pred_check
          %p193 = pneg %p192
        $region64: #{dssa_forward.3} parent=57 // pred_check_branch
          %195 = sbr.rel (%p193) target = $region66
        $region65: #{dssa_forward.3} parent=57 // pred_region
          %196 = vst [vmem:[#allocation2] sm:$0xff] 0.0
          %197 = vst [vmem:[#allocation2 + $0x8] sm:$0xff] 0.0
          %198 = vst [vmem:[#allocation2 + $0x10] sm:$0xff] 0.0
          %199 = vst [vmem:[#allocation2 + $0x18] sm:$0xff] 0.0
        $region66: #{dssa_forward.3} parent=57 // pred_fallthru
          _
        %v200 = vld [vmem:[%s174] sm:$0xff]
        %v201 = vld [vmem:[%s174 + $0x8] sm:$0xff]
        %v202 = vld [vmem:[%s174 + $0x10] sm:$0xff]
        %v203 = vld [vmem:[%s174 + $0x18] sm:$0xff]
        %v204 = vld [vmem:[#allocation2] sm:$0xff]
        %v205 = vld [vmem:[#allocation2 + $0x8] sm:$0xff]
        %v206 = vld [vmem:[#allocation2 + $0x10] sm:$0xff]
        %v207 = vld [vmem:[#allocation2 + $0x18] sm:$0xff]
        %v208 = vsub.f32 %v200, %v204
        %v209 = vsub.f32 %v201, %v205
        %v210 = vsub.f32 %v202, %v206
        %v211 = vsub.f32 %v203, %v207
        %v212 = vmul.f32 %v208, 0.5
        %v213 = vmul.f32 %v209, 0.5
        %v214 = vmul.f32 %v210, 0.5
        %v215 = vmul.f32 %v211, 0.5
        %v216 = vadd.f32 %v204, %v212
        %v217 = vadd.f32 %v205, %v213
        %v218 = vadd.f32 %v206, %v214
        %v219 = vadd.f32 %v207, %v215
        %vm220 = vcmp.ge.f32.partialorder %v216, 1.0
        %vm221 = vcmp.ge.f32.partialorder %v217, 1.0
        %vm222 = vcmp.ge.f32.partialorder %v218, 1.0
        %vm223 = vcmp.ge.f32.partialorder %v219, 1.0
        %v224 = vsel %vm220, 0.0, %v216
        %v225 = vsel %vm221, 0.0, %v217
        %v226 = vsel %vm222, 0.0, %v218
        %v227 = vsel %vm223, 0.0, %v219
        %228 = vst [vmem:[#allocation2] sm:$0xff] %v224
        %229 = vst [vmem:[#allocation2 + $0x8] sm:$0xff] %v225
        %230 = vst [vmem:[#allocation2 + $0x10] sm:$0xff] %v226
        %231 = vst [vmem:[#allocation2 + $0x18] sm:$0xff] %v227
        %v232 = vsel %vm220, 1, 0
        %v233 = vsel %vm221, 1, 0
        %v234 = vsel %vm222, 1, 0
        %v235 = vsel %vm223, 1, 0
        %v236 = vcvt.s32.f32 %v232
        %v237 = vcvt.s32.f32 %v233
        %v238 = vcvt.s32.f32 %v234
        %v239 = vcvt.s32.f32 %v235
        %v240 = vpack.c.bf16 %v237, %v236
        %v241 = vpack.c.bf16 %v239, %v238
        %v244 = vunpack.c.l.b16 %v240
        %v245 = vunpack.c.h.b16 %v240
        %v246 = vunpack.c.l.b16 %v241
        %v247 = vunpack.c.h.b16 %v241
        %v248 = vpack.c.b16 %v244, %v244
        %v249 = vpack.c.b16 %v245, %v245
        %v250 = vpack.c.b16 %v246, %v246
        %v251 = vpack.c.b16 %v247, %v247
        %256 = vst [vmem:[%s189] sm:$0xf] %v248
        %257 = vst [vmem:[%s189 + $0x4] sm:$0xf] %v249
        %258 = vst [vmem:[%s189 + $0x8] sm:$0xf] %v250
        %259 = vst [vmem:[%s189 + $0xc] sm:$0xf] %v251
        %s260 = sand.u32 %s73, 1
        %s261 = sand.u32 %s73, 1
        %s262 = smul.addr %s261, 16
        %s263 = scalar_lea.vmem [#allocation4], %s262
        // Predicated region
        $region67: #{dssa_forward.3} parent=57 // pred_check
          %p264 = pneg %p83
        $region68: #{dssa_forward.3} parent=57 // pred_check_branch
          %266 = sbr.rel (%p264) target = $region70
        $region69: #{dssa_forward.3} parent=57 // pred_region
          %s267 = smul.u32 4, %s17
          %s268 = smul.addr %s267, 2
          %s269 = sadd.s32 %s18, %s268
          %s270 = smul.addr %s19, 16
          %s271 = sadd.s32 %s269, %s270
          %s272 = smul.addr %s271, 4
          %s273 = scalar_lea.vmem %s1, %s272
          // Predicated region
          $region71: #{dssa_forward.3} parent=69 // pred_check
            _
          $region72: #{dssa_forward.3} parent=69 // pred_check_branch
            %275 = sbr.rel (0) target = $region74
          $region73: #{dssa_forward.3} parent=69 // pred_region
            // Predicated region
            $region75: #{dssa_forward.3} parent=73 // pred_check
              _
            $region76: #{dssa_forward.3} parent=73 // pred_check_branch
              %277 = sbr.rel target = $region78
            $region77: #{dssa_forward.3} parent=73 // pred_region
              // Predicated region
              $region90: #{dssa_forward.3} parent=77 // pred_check
                _
              $region91: #{dssa_forward.3} parent=77 // pred_check_branch
                %299 = sbr.rel (0) target = $region93
              $region92: #{dssa_forward.3} parent=77 // pred_region
                loop: start=0, step=1, limit=1
                $region94: #{dssa_forward.3} parent=92 // loop_pre_header
                  _
                $region95: #{dssa_forward.3} parent=92 // loop_header
                  %s301 = sphi 0, %s305
                  %p302 = scmp.ge.s32.totalorder %s301, 1
                  %s306 = sphi %s263, %s263
                  %s307 = sphi %s273, %s273
                $region96: #{dssa_forward.3} parent=92 // loop_header_branch
                  %304 = sbr.rel (%p302) target = $region100
                $region97: #{dssa_forward.3} parent=92 // loop_body
                  _
                $region98: #{dssa_forward.3} parent=92 // loop_footer
                  %s305 = sadd.s32 1, %s301
                $region99: #{dssa_forward.3} parent=92 // loop_footer_branch
                  %300 = sbr.rel target = $region95
                $region100: #{dssa_forward.3} parent=92 // loop_exit
                  _
                %s309 = ssub.s32 16, 1
                loop: start=0, step=1, limit=1
                $region101: #{dssa_forward.3} parent=92 // loop_pre_header
                  _
                $region102: #{dssa_forward.3} parent=92 // loop_header
                  %s311 = sphi 0, %s315
                  %p312 = scmp.ge.s32.totalorder %s311, 1
                  %s316 = sphi %s263, %s263
                  %s317 = sphi %s273, %s273
                $region103: #{dssa_forward.3} parent=92 // loop_header_branch
                  %314 = sbr.rel (%p312) target = $region107
                $region104: #{dssa_forward.3} parent=92 // loop_body
                  %v318 = vld [vmem:[%s316] sm:%s309]
                  %319 = vst [vmem:[%s317] sm:%s309] %v318
                  %v320 = vld [vmem:[%s316 + $0x4] sm:%s309]
                  %321 = vst [vmem:[%s317 + $0x8] sm:%s309] %v320
                  %v322 = vld [vmem:[%s316 + $0x8] sm:%s309]
                  %323 = vst [vmem:[%s317 + $0x10] sm:%s309] %v322
                  %v324 = vld [vmem:[%s316 + $0xc] sm:%s309]
                  %325 = vst [vmem:[%s317 + $0x18] sm:%s309] %v324
                $region105: #{dssa_forward.3} parent=92 // loop_footer
                  %s315 = sadd.s32 1, %s311
                $region106: #{dssa_forward.3} parent=92 // loop_footer_branch
                  %310 = sbr.rel target = $region102
                $region107: #{dssa_forward.3} parent=92 // loop_exit
                  _
              $region93: #{dssa_forward.3} parent=77 // pred_fallthru
                _
            $region78: #{dssa_forward.3} parent=73 // pred_fallthru
              _
            // Predicated region
            $region79: #{dssa_forward.3} parent=73 // pred_check
              _
            $region80: #{dssa_forward.3} parent=73 // pred_check_branch
              %279 = sbr.rel (0) target = $region82
            $region81: #{dssa_forward.3} parent=73 // pred_region
              %s281 = ssub.s32 16, 1
              loop: start=0, step=1, limit=1
              $region83: #{dssa_forward.3} parent=81 // loop_pre_header
                _
              $region84: #{dssa_forward.3} parent=81 // loop_header
                %s283 = sphi 0, %s287
                %p284 = scmp.ge.s32.totalorder %s283, 1
                %s288 = sphi %s263, %s263
                %s289 = sphi %s273, %s273
              $region85: #{dssa_forward.3} parent=81 // loop_header_branch
                %286 = sbr.rel (%p284) target = $region89
              $region86: #{dssa_forward.3} parent=81 // loop_body
                %v290 = vld [vmem:[%s288] sm:%s281]
                %291 = vst [vmem:[%s289] sm:%s281] %v290
                %v292 = vld [vmem:[%s288 + $0x4] sm:%s281]
                %293 = vst [vmem:[%s289 + $0x8] sm:%s281] %v292
                %v294 = vld [vmem:[%s288 + $0x8] sm:%s281]
                %295 = vst [vmem:[%s289 + $0x10] sm:%s281] %v294
                %v296 = vld [vmem:[%s288 + $0xc] sm:%s281]
                %297 = vst [vmem:[%s289 + $0x18] sm:%s281] %v296
              $region87: #{dssa_forward.3} parent=81 // loop_footer
                %s287 = sadd.s32 1, %s283
              $region88: #{dssa_forward.3} parent=81 // loop_footer_branch
                %282 = sbr.rel target = $region84
              $region89: #{dssa_forward.3} parent=81 // loop_exit
                _
            $region82: #{dssa_forward.3} parent=73 // pred_fallthru
              _
          $region74: #{dssa_forward.3} parent=69 // pred_fallthru
            _
          %326 = vnop
        $region70: #{dssa_forward.3} parent=57 // pred_fallthru
          _
      $region58: #{dssa_forward.3} parent=5 // pred_fallthru
        _
      %p327 = scmp.le.s32.totalorder 2, %s7
      // Predicated region
      $region108: #{dssa_forward.3} parent=5 // pred_check
        %p328 = pneg %p327
      $region109: #{dssa_forward.3} parent=5 // pred_check_branch
        %330 = sbr.rel (%p328) target = $region111
      $region110: #{dssa_forward.3} parent=5 // pred_region
        %s331 = ssub.s32 %s7, 2
        // Predicated region
        $region112: #{dssa_forward.3} parent=110 // pred_check
          %p332 = pneg %p89
        $region113: #{dssa_forward.3} parent=110 // pred_check_branch
          %334 = sbr.rel (%p332) target = $region115
        $region114: #{dssa_forward.3} parent=110 // pred_region
          %s335 = sand.u32 %s74, 1
          %s336 = sand.u32 %s74, 1
          %s337 = smul.addr %s336, 16
          %s338 = scalar_lea.vmem [#allocation4], %s337
        $region115: #{dssa_forward.3} parent=110 // pred_fallthru
          _
      $region111: #{dssa_forward.3} parent=5 // pred_fallthru
        _
    $region6: #{dssa_forward.3} parent=1 // loop_footer
      %s11 = sadd.s32 1, %s7
    $region7: #{dssa_forward.3} parent=1 // loop_footer_branch
      %6 = sbr.rel target = $region3
    $region8: #{dssa_forward.3} parent=1 // loop_exit
      _

// kernel: dssa_forward.4
$region0: #{dssa_forward.4}
  #allocation0 [shape = 'u32[]', space=smem, size = 0x4, offset = 0x4, fixed_abs, tag = 'smem constant byte address 0x4 - core index']
  #allocation1 [shape = 'u32[144,128]{1,0:T(1,128)}', space=vmem, size = 0x12000, scoped, tag = 'internal scratch']
  %s0 = inlined_call_operand.vmem [shape: bf16[2,2,512,16], index: 0, kind: input, shape index: {}]
  %s1 = inlined_call_operand.vmem [shape: bf16[64,512], index: 1, kind: input, shape index: {}]
  %s2 = inlined_call_operand.vmem [shape: f32[64,1], index: 2, kind: input, shape index: {}]
  %s3 = inlined_call_operand.vmem [shape: bf16[2,2,64,16], index: 3, kind: output, shape index: {}]
  %s4 = sld [smem:[#allocation0]]
  $region45: #{dssa_forward.4} parent=0
    _
  %s6 = ssub.s32 1, %s4
  %s7 = scalar_select 0, %s6, %s4
  loop: start=0, step=1, limit=6
  $region2: #{dssa_forward.4} parent=0 // loop_pre_header
    _
  $region3: #{dssa_forward.4} parent=0 // loop_header
    %s9 = sphi 0, %s13
    %p10 = scmp.ge.s32.totalorder %s9, 6
    %s16 = sphi 0, %s28
    %s17 = sphi 0, %s24
    %s18 = sphi 0, %s16
    %s19 = sphi 0, %s17
    %s20 = sphi 0, %s18
    %s21 = sphi 0, %s19
    %s33 = sphi 0, %s35
    %s36 = sphi 0, %s33
    %s37 = sphi 0, %s36
    %s53 = sphi 0, %s37
    %s57 = sphi 0, %s57
    %s59 = sphi 0, %s57
    %s60 = sphi 0, %s59
    %s74 = sphi 0, %s60
    %s78 = sphi 0, %s78
    %s80 = sphi 0, %s78
    %s81 = sphi 0, %s80
    %s95 = sphi 0, %s81
    %s103 = sphi 0, %s105
    %s106 = sphi 0, %s103
    %s107 = sphi 0, %s106
    %s123 = sphi 0, %s107
  $region4: #{dssa_forward.4} parent=0 // loop_header_branch
    %12 = sbr.rel (%p10) target = $region8
  $region5: #{dssa_forward.4} parent=0 // loop_body
    %s14 = ssub.s32 %s9, 1
    %s15 = ssub.s32 %s9, 2
    %s22 = sadd.s32 1, %s17
    %p23 = scmp.ge.s32.totalorder %s22, 2
    %s24 = scalar_select %p23, 0, %s22
    %s25 = sadd.s32 1, %s16
    %s26 = scalar_select %p23, %s25, %s16
    %p27 = scmp.ge.s32.totalorder %s26, 2
    %s28 = scalar_select %p27, 0, %s26
    %s29 = ssub.s32 %s16, %s28
    %s30 = ssub.s32 %s17, %s24
    %s31 = sor.u32 %s29, %s30
    %p32 = scmp.eq.s32.totalorder %s31, 0
    %s34 = sadd.s32 %s33, 1
    %s35 = scalar_select %p32, %s33, %s34
    %p38 = pneg %p32
    %p39 = scmp.eq.s32.totalorder %s9, 3
    %p40 = por %p38, %p39
    %p41 = scmp.ne.s32.totalorder %s33, %s36
    %p42 = scmp.eq.s32.totalorder %s9, 0
    %p43 = por %p41, %p42
    %p44 = scmp.ne.s32.totalorder %s33, %s36
    %p45 = scmp.eq.s32.totalorder %s14, 3
    %p46 = por %p44, %p45
    %p47 = scmp.ne.s32.totalorder %s36, %s37
    %p48 = scmp.eq.s32.totalorder %s14, 0
    %p49 = por %p47, %p48
    %p50 = scmp.ne.s32.totalorder %s36, %s37
    %p51 = scmp.eq.s32.totalorder %s15, 3
    %p52 = por %p50, %p51
    %p54 = scmp.ne.s32.totalorder %s37, %s53
    %p55 = scmp.eq.s32.totalorder %s15, 0
    %p56 = por %p54, %p55
    %s58 = sadd.s32 %s57, 1
    %p61 = scmp.eq.s32.totalorder %s9, 3
    %p62 = scmp.ne.s32.totalorder %s57, %s59
    %p63 = scmp.eq.s32.totalorder %s9, 0
    %p64 = por %p62, %p63
    %p65 = scmp.ne.s32.totalorder %s57, %s59
    %p66 = scmp.eq.s32.totalorder %s14, 3
    %p67 = por %p65, %p66
    %p68 = scmp.ne.s32.totalorder %s59, %s60
    %p69 = scmp.eq.s32.totalorder %s14, 0
    %p70 = por %p68, %p69
    %p71 = scmp.ne.s32.totalorder %s59, %s60
    %p72 = scmp.eq.s32.totalorder %s15, 3
    %p73 = por %p71, %p72
    %p75 = scmp.ne.s32.totalorder %s60, %s74
    %p76 = scmp.eq.s32.totalorder %s15, 0
    %p77 = por %p75, %p76
    %s79 = sadd.s32 %s78, 1
    %p82 = scmp.eq.s32.totalorder %s9, 3
    %p83 = scmp.ne.s32.totalorder %s78, %s80
    %p84 = scmp.eq.s32.totalorder %s9, 0
    %p85 = por %p83, %p84
    %p86 = scmp.ne.s32.totalorder %s78, %s80
    %p87 = scmp.eq.s32.totalorder %s14, 3
    %p88 = por %p86, %p87
    %p89 = scmp.ne.s32.totalorder %s80, %s81
    %p90 = scmp.eq.s32.totalorder %s14, 0
    %p91 = por %p89, %p90
    %p92 = scmp.ne.s32.totalorder %s80, %s81
    %p93 = scmp.eq.s32.totalorder %s15, 3
    %p94 = por %p92, %p93
    %p96 = scmp.ne.s32.totalorder %s81, %s95
    %p97 = scmp.eq.s32.totalorder %s15, 0
    %p98 = por %p96, %p97
    %s99 = ssub.s32 %s16, %s28
    %s100 = ssub.s32 %s17, %s24
    %s101 = sor.u32 %s99, %s100
    %p102 = scmp.eq.s32.totalorder %s101, 0
    %s104 = sadd.s32 %s103, 1
    %s105 = scalar_select %p102, %s103, %s104
    %p108 = pneg %p102
    %p109 = scmp.eq.s32.totalorder %s9, 3
    %p110 = por %p108, %p109
    %p111 = scmp.ne.s32.totalorder %s103, %s106
    %p112 = scmp.eq.s32.totalorder %s9, 0
    %p113 = por %p111, %p112
    %p114 = scmp.ne.s32.totalorder %s103, %s106
    %p115 = scmp.eq.s32.totalorder %s14, 3
    %p116 = por %p114, %p115
    %p117 = scmp.ne.s32.totalorder %s106, %s107
    %p118 = scmp.eq.s32.totalorder %s14, 0
    %p119 = por %p117, %p118
    %p120 = scmp.ne.s32.totalorder %s106, %s107
    %p121 = scmp.eq.s32.totalorder %s15, 3
    %p122 = por %p120, %p121
    %p124 = scmp.ne.s32.totalorder %s107, %s123
    %p125 = scmp.eq.s32.totalorder %s15, 0
    %p126 = por %p124, %p125
    %p127 = scmp.le.s32.totalorder 1, %s9
    %p128 = scmp.lt.s32.totalorder %s9, 5
    %p129 = pnand %p127, %p128
    %p130 = pneg %p129
    // Predicated region
    $region9: #{dssa_forward.4} parent=5 // pred_check
      _
    $region10: #{dssa_forward.4} parent=5 // pred_check_branch
      %132 = sbr.rel (%p129) target = $region12
    $region11: #{dssa_forward.4} parent=5 // pred_region
      %s133 = ssub.s32 %s9, 1
      // Predicated region
      $region13: #{dssa_forward.4} parent=11 // pred_check
        %p134 = pneg %p70
      $region14: #{dssa_forward.4} parent=11 // pred_check_branch
        %136 = sbr.rel (%p134) target = $region16
      $region15: #{dssa_forward.4} parent=11 // pred_region
        _
      $region16: #{dssa_forward.4} parent=11 // pred_fallthru
        _
      // Predicated region
      $region17: #{dssa_forward.4} parent=11 // pred_check
        %p137 = pneg %p91
      $region18: #{dssa_forward.4} parent=11 // pred_check_branch
        %139 = sbr.rel (%p137) target = $region20
      $region19: #{dssa_forward.4} parent=11 // pred_region
        _
      $region20: #{dssa_forward.4} parent=11 // pred_fallthru
        _
    $region12: #{dssa_forward.4} parent=5 // pred_fallthru
      _
    %p140 = scmp.lt.s32.totalorder %s9, 4
    // Predicated region
    $region21: #{dssa_forward.4} parent=5 // pred_check
      %p141 = pneg %p140
    $region22: #{dssa_forward.4} parent=5 // pred_check_branch
      %143 = sbr.rel (%p141) target = $region24
    $region23: #{dssa_forward.4} parent=5 // pred_region
      // Predicated region
      $region25: #{dssa_forward.4} parent=23 // pred_check
        %p144 = pneg %p43
      $region26: #{dssa_forward.4} parent=23 // pred_check_branch
        %146 = sbr.rel (%p144) target = $region28
      $region27: #{dssa_forward.4} parent=23 // pred_region
        %p147 = scmp.lt.s32.totalorder %s16, 1
        %s148 = scalar_select %p147, %s16, 1
        %p149 = scmp.lt.s32.totalorder %s17, 1
        %s150 = scalar_select %p149, %s17, 1
        %s151 = smul.addr %s150, 64
        %s152 = smul.addr %s148, 128
        %s153 = sadd.s32 %s151, %s152
        %s154 = smul.addr %s153, 4
        %s155 = scalar_lea.vmem %s0, %s154
      $region28: #{dssa_forward.4} parent=23 // pred_fallthru
        _
    $region24: #{dssa_forward.4} parent=5 // pred_fallthru
      _
    %p156 = scmp.le.s32.totalorder 1, %s9
    %p157 = scmp.lt.s32.totalorder %s9, 5
    %p158 = pnand %p156, %p157
    %p159 = pneg %p158
    // Predicated region
    $region29: #{dssa_forward.4} parent=5 // pred_check
      _
    $region30: #{dssa_forward.4} parent=5 // pred_check_branch
      %161 = sbr.rel (%p158) target = $region32
    $region31: #{dssa_forward.4} parent=5 // pred_region
      %s162 = ssub.s32 %s9, 1
      %p163 = scmp.lt.s32.totalorder %s18, 1
      %s164 = scalar_select %p163, %s18, 1
      %p165 = scmp.lt.s32.totalorder %s19, 1
      %s166 = scalar_select %p165, %s19, 1
      %s167 = smul.addr %s166, 64
      %s168 = smul.addr %s164, 128
      %s169 = sadd.s32 %s167, %s168
      %s170 = smul.addr %s169, 4
      %s171 = scalar_lea.vmem %s0, %s170
      %p172 = pneg %p49
      %p173 = pneg %p46
      %p174 = pneg %p70
      %p175 = pneg %p67
      %p176 = pneg %p91
      %p177 = pneg %p88
      %p178 = pneg %p119
      %p179 = pneg %p116
      %p180 = scmp.lt.s32.totalorder %s18, 1
      %s181 = scalar_select %p180, %s18, 1
      %p182 = scmp.lt.s32.totalorder %s19, 1
      %s183 = scalar_select %p182, %s19, 1
      %s184 = smul.addr %s183, 8
      %s185 = smul.addr %s181, 16
      %s186 = sadd.s32 %s184, %s185
      %s187 = smul.addr %s186, 4
      %s188 = scalar_lea.vmem %s3, %s187
      %p189 = scmp.lt.s32.totalorder %s18, 1
      %s190 = scalar_select %p189, %s18, 1
      %p191 = scmp.lt.s32.totalorder %s19, 1
      %s192 = scalar_select %p191, %s19, 1
      %s193 = smul.addr %s192, 64
      %s194 = smul.addr %s190, 128
      %s195 = sadd.s32 %s193, %s194
      %s196 = smul.addr %s195, 4
      %s197 = scalar_lea.vmem %s0, %s196
      %p198 = scmp.lt.s32.totalorder %s18, 1
      %s199 = scalar_select %p198, %s18, 1
      %p200 = scmp.lt.s32.totalorder %s19, 1
      %s201 = scalar_select %p200, %s19, 1
      %s202 = smul.addr %s201, 8
      %s203 = smul.addr %s199, 16
      %s204 = sadd.s32 %s202, %s203
      %s205 = smul.addr %s204, 4
      %s206 = scalar_lea.vmem %s3, %s205
      %v208 = vld [vmem:[%s1] sm:$0xff]
      %v209 = vld [vmem:[%s1 + $0x8] sm:$0xff]
      %v210 = vld [vmem:[%s1 + $0x10] sm:$0xff]
      %v211 = vld [vmem:[%s1 + $0x18] sm:$0xff]
      %v212 = vld [vmem:[%s1 + $0x20] sm:$0xff]
      %v213 = vld [vmem:[%s1 + $0x28] sm:$0xff]
      %v214 = vld [vmem:[%s1 + $0x30] sm:$0xff]
      %v215 = vld [vmem:[%s1 + $0x38] sm:$0xff]
      %v216 = vld [vmem:[%s1 + $0x40] sm:$0xff]
      %v217 = vld [vmem:[%s1 + $0x48] sm:$0xff]
      %v218 = vld [vmem:[%s1 + $0x50] sm:$0xff]
      %v219 = vld [vmem:[%s1 + $0x58] sm:$0xff]
      %v220 = vld [vmem:[%s1 + $0x60] sm:$0xff]
      %v221 = vld [vmem:[%s1 + $0x68] sm:$0xff]
      %v222 = vld [vmem:[%s1 + $0x70] sm:$0xff]
      %v223 = vld [vmem:[%s1 + $0x78] sm:$0xff]
      %v224 = vld [vmem:[%s197] sm:$0xf]
      %v225 = vld [vmem:[%s197 + $0x4] sm:$0xf]
      %v226 = vld [vmem:[%s197 + $0x8] sm:$0xf]
      %v227 = vld [vmem:[%s197 + $0xc] sm:$0xf]
      %v228 = vld [vmem:[%s197 + $0x10] sm:$0xf]
      %v229 = vld [vmem:[%s197 + $0x14] sm:$0xf]
      %v230 = vld [vmem:[%s197 + $0x18] sm:$0xf]
      %v231 = vld [vmem:[%s197 + $0x1c] sm:$0xf]
      %v232 = vld [vmem:[%s197 + $0x20] sm:$0xf]
      %v233 = vld [vmem:[%s197 + $0x24] sm:$0xf]
      %v234 = vld [vmem:[%s197 + $0x28] sm:$0xf]
      %v235 = vld [vmem:[%s197 + $0x2c] sm:$0xf]
      %v236 = vld [vmem:[%s197 + $0x30] sm:$0xf]
      %v237 = vld [vmem:[%s197 + $0x34] sm:$0xf]
      %v238 = vld [vmem:[%s197 + $0x38] sm:$0xf]
      %v239 = vld [vmem:[%s197 + $0x3c] sm:$0xf]
      %v240 = vld [vmem:[%s197 + $0x40] sm:$0xf]
      %v241 = vld [vmem:[%s197 + $0x44] sm:$0xf]
      %v242 = vld [vmem:[%s197 + $0x48] sm:$0xf]
      %v243 = vld [vmem:[%s197 + $0x4c] sm:$0xf]
      %v244 = vld [vmem:[%s197 + $0x50] sm:$0xf]
      %v245 = vld [vmem:[%s197 + $0x54] sm:$0xf]
      %v246 = vld [vmem:[%s197 + $0x58] sm:$0xf]
      %v247 = vld [vmem:[%s197 + $0x5c] sm:$0xf]
      %v248 = vld [vmem:[%s197 + $0x60] sm:$0xf]
      %v249 = vld [vmem:[%s197 + $0x64] sm:$0xf]
      %v250 = vld [vmem:[%s197 + $0x68] sm:$0xf]
      %v251 = vld [vmem:[%s197 + $0x6c] sm:$0xf]
      %v252 = vld [vmem:[%s197 + $0x70] sm:$0xf]
      %v253 = vld [vmem:[%s197 + $0x74] sm:$0xf]
      %v254 = vld [vmem:[%s197 + $0x78] sm:$0xf]
      %v255 = vld [vmem:[%s197 + $0x7c] sm:$0xf]
      %v256 = vld [vmem:[%s197 + $0x80] sm:$0xf]
      %v257 = vld [vmem:[%s197 + $0x84] sm:$0xf]
      %v258 = vld [vmem:[%s197 + $0x88] sm:$0xf]
      %v259 = vld [vmem:[%s197 + $0x8c] sm:$0xf]
      %v260 = vld [vmem:[%s197 + $0x90] sm:$0xf]
      %v261 = vld [vmem:[%s197 + $0x94] sm:$0xf]
      %v262 = vld [vmem:[%s197 + $0x98] sm:$0xf]
      %v263 = vld [vmem:[%s197 + $0x9c] sm:$0xf]
      %v264 = vld [vmem:[%s197 + $0xa0] sm:$0xf]
      %v265 = vld [vmem:[%s197 + $0xa4] sm:$0xf]
      %v266 = vld [vmem:[%s197 + $0xa8] sm:$0xf]
      %v267 = vld [vmem:[%s197 + $0xac] sm:$0xf]
      %v268 = vld [vmem:[%s197 + $0xb0] sm:$0xf]
      %v269 = vld [vmem:[%s197 + $0xb4] sm:$0xf]
      %v270 = vld [vmem:[%s197 + $0xb8] sm:$0xf]
      %v271 = vld [vmem:[%s197 + $0xbc] sm:$0xf]
      %v272 = vld [vmem:[%s197 + $0xc0] sm:$0xf]
      %v273 = vld [vmem:[%s197 + $0xc4] sm:$0xf]
      %v274 = vld [vmem:[%s197 + $0xc8] sm:$0xf]
      %v275 = vld [vmem:[%s197 + $0xcc] sm:$0xf]
      %v276 = vld [vmem:[%s197 + $0xd0] sm:$0xf]
      %v277 = vld [vmem:[%s197 + $0xd4] sm:$0xf]
      %v278 = vld [vmem:[%s197 + $0xd8] sm:$0xf]
      %v279 = vld [vmem:[%s197 + $0xdc] sm:$0xf]
      %v280 = vld [vmem:[%s197 + $0xe0] sm:$0xf]
      %v281 = vld [vmem:[%s197 + $0xe4] sm:$0xf]
      %v282 = vld [vmem:[%s197 + $0xe8] sm:$0xf]
      %v283 = vld [vmem:[%s197 + $0xec] sm:$0xf]
      %v284 = vld [vmem:[%s197 + $0xf0] sm:$0xf]
      %v285 = vld [vmem:[%s197 + $0xf4] sm:$0xf]
      %v286 = vld [vmem:[%s197 + $0xf8] sm:$0xf]
      %v287 = vld [vmem:[%s197 + $0xfc] sm:$0xf]
      %v288 = vld [vmem:[%s2] sm:$0xff]
      %v289 = vld [vmem:[%s2 + $0x8] sm:$0xff]
      %v290 = vld [vmem:[%s2 + $0x10] sm:$0xff]
      %v291 = vld [vmem:[%s2 + $0x18] sm:$0xff]
      %v292 = vld [vmem:[%s2 + $0x20] sm:$0xff]
      %v293 = vld [vmem:[%s2 + $0x28] sm:$0xff]
      %v294 = vld [vmem:[%s2 + $0x30] sm:$0xff]
      %v295 = vld [vmem:[%s2 + $0x38] sm:$0xff]
      %297 = vset.pattern.permute.xlu0 0
      %298 = vperm.xlu0 %297, %v288
      %v299 = vpop.permute.xlu0 %298
      %302 = vset.pattern.permute.xlu0 0
      %303 = vperm.xlu0 %302, %v289
      %v304 = vpop.permute.xlu0 %303
      %307 = vset.pattern.permute.xlu0 0
      %308 = vperm.xlu0 %307, %v290
      %v309 = vpop.permute.xlu0 %308
      %312 = vset.pattern.permute.xlu0 0
      %313 = vperm.xlu0 %312, %v291
      %v314 = vpop.permute.xlu0 %313
      %317 = vset.pattern.permute.xlu0 0
      %318 = vperm.xlu0 %317, %v292
      %v319 = vpop.permute.xlu0 %318
      %322 = vset.pattern.permute.xlu0 0
      %323 = vperm.xlu0 %322, %v293
      %v324 = vpop.permute.xlu0 %323
      %327 = vset.pattern.permute.xlu0 0
      %328 = vperm.xlu0 %327, %v294
      %v329 = vpop.permute.xlu0 %328
      %332 = vset.pattern.permute.xlu0 0
      %333 = vperm.xlu0 %332, %v295
      %v334 = vpop.permute.xlu0 %333
      %v352 = vunpack.c.l.b16 %v208
      %v353 = vunpack.c.h.b16 %v208
      %v354 = vunpack.c.l.b16 %v209
      %v355 = vunpack.c.h.b16 %v209
      %v356 = vunpack.c.l.b16 %v210
      %v357 = vunpack.c.h.b16 %v210
      %v358 = vunpack.c.l.b16 %v211
      %v359 = vunpack.c.h.b16 %v211
      %v360 = vunpack.c.l.b16 %v212
      %v361 = vunpack.c.h.b16 %v212
      %v362 = vunpack.c.l.b16 %v213
      %v363 = vunpack.c.h.b16 %v213
      %v364 = vunpack.c.l.b16 %v214
      %v365 = vunpack.c.h.b16 %v214
      %v366 = vunpack.c.l.b16 %v215
      %v367 = vunpack.c.h.b16 %v215
      %v368 = vunpack.c.l.b16 %v216
      %v369 = vunpack.c.h.b16 %v216
      %v370 = vunpack.c.l.b16 %v217
      %v371 = vunpack.c.h.b16 %v217
      %v372 = vunpack.c.l.b16 %v218
      %v373 = vunpack.c.h.b16 %v218
      %v374 = vunpack.c.l.b16 %v219
      %v375 = vunpack.c.h.b16 %v219
      %v376 = vunpack.c.l.b16 %v220
      %v377 = vunpack.c.h.b16 %v220
      %v378 = vunpack.c.l.b16 %v221
      %v379 = vunpack.c.h.b16 %v221
      %v380 = vunpack.c.l.b16 %v222
      %v381 = vunpack.c.h.b16 %v222
      %v382 = vunpack.c.l.b16 %v223
      %v383 = vunpack.c.h.b16 %v223
      %v384 = vpack.c.b16 %v356, %v352
      %v385 = vpack.c.b16 %v357, %v353
      %v386 = vpack.c.b16 %v358, %v354
      %v387 = vpack.c.b16 %v359, %v355
      %v388 = vpack.c.b16 %v364, %v360
      %v389 = vpack.c.b16 %v365, %v361
      %v390 = vpack.c.b16 %v366, %v362
      %v391 = vpack.c.b16 %v367, %v363
      %v392 = vpack.c.b16 %v372, %v368
      %v393 = vpack.c.b16 %v373, %v369
      %v394 = vpack.c.b16 %v374, %v370
      %v395 = vpack.c.b16 %v375, %v371
      %v396 = vpack.c.b16 %v380, %v376
      %v397 = vpack.c.b16 %v381, %v377
      %v398 = vpack.c.b16 %v382, %v378
      %v399 = vpack.c.b16 %v383, %v379
      %v480 = vunpack.c.l.b16 %v224
      %v481 = vunpack.c.l.b16 %v225
      %v482 = vunpack.c.l.b16 %v226
      %v483 = vunpack.c.l.b16 %v227
      %v484 = vunpack.c.l.b16 %v228
      %v485 = vunpack.c.l.b16 %v229
      %v486 = vunpack.c.l.b16 %v230
      %v487 = vunpack.c.l.b16 %v231
      %v488 = vunpack.c.l.b16 %v232
      %v489 = vunpack.c.l.b16 %v233
      %v490 = vunpack.c.l.b16 %v234
      %v491 = vunpack.c.l.b16 %v235
      %v492 = vunpack.c.l.b16 %v236
      %v493 = vunpack.c.l.b16 %v237
      %v494 = vunpack.c.l.b16 %v238
      %v495 = vunpack.c.l.b16 %v239
      %v496 = vunpack.c.l.b16 %v240
      %v497 = vunpack.c.l.b16 %v241
      %v498 = vunpack.c.l.b16 %v242
      %v499 = vunpack.c.l.b16 %v243
      %v500 = vunpack.c.l.b16 %v244
      %v501 = vunpack.c.l.b16 %v245
      %v502 = vunpack.c.l.b16 %v246
      %v503 = vunpack.c.l.b16 %v247
      %v504 = vunpack.c.l.b16 %v248
      %v505 = vunpack.c.l.b16 %v249
      %v506 = vunpack.c.l.b16 %v250
      %v507 = vunpack.c.l.b16 %v251
      %v508 = vunpack.c.l.b16 %v252
      %v509 = vunpack.c.l.b16 %v253
      %v510 = vunpack.c.l.b16 %v254
      %v511 = vunpack.c.l.b16 %v255
      %v512 = vunpack.c.l.b16 %v256
      %v513 = vunpack.c.l.b16 %v257
      %v514 = vunpack.c.l.b16 %v258
      %v515 = vunpack.c.l.b16 %v259
      %v516 = vunpack.c.l.b16 %v260
      %v517 = vunpack.c.l.b16 %v261
      %v518 = vunpack.c.l.b16 %v262
      %v519 = vunpack.c.l.b16 %v263
      %v520 = vunpack.c.l.b16 %v264
      %v521 = vunpack.c.l.b16 %v265
      %v522 = vunpack.c.l.b16 %v266
      %v523 = vunpack.c.l.b16 %v267
      %v524 = vunpack.c.l.b16 %v268
      %v525 = vunpack.c.l.b16 %v269
      %v526 = vunpack.c.l.b16 %v270
      %v527 = vunpack.c.l.b16 %v271
      %v528 = vunpack.c.l.b16 %v272
      %v529 = vunpack.c.l.b16 %v273
      %v530 = vunpack.c.l.b16 %v274
      %v531 = vunpack.c.l.b16 %v275
      %v532 = vunpack.c.l.b16 %v276
      %v533 = vunpack.c.l.b16 %v277
      %v534 = vunpack.c.l.b16 %v278
      %v535 = vunpack.c.l.b16 %v279
      %v536 = vunpack.c.l.b16 %v280
      %v537 = vunpack.c.l.b16 %v281
      %v538 = vunpack.c.l.b16 %v282
      %v539 = vunpack.c.l.b16 %v283
      %v540 = vunpack.c.l.b16 %v284
      %v541 = vunpack.c.l.b16 %v285
      %v542 = vunpack.c.l.b16 %v286
      %v543 = vunpack.c.l.b16 %v287
      %v544 = vpack.c.b16 %v481, %v480
      %v545 = vpack.c.b16 %v483, %v482
      %v546 = vpack.c.b16 %v485, %v484
      %v547 = vpack.c.b16 %v487, %v486
      %v548 = vpack.c.b16 %v489, %v488
      %v549 = vpack.c.b16 %v491, %v490
      %v550 = vpack.c.b16 %v493, %v492
      %v551 = vpack.c.b16 %v495, %v494
      %v552 = vpack.c.b16 %v497, %v496
      %v553 = vpack.c.b16 %v499, %v498
      %v554 = vpack.c.b16 %v501, %v500
      %v555 = vpack.c.b16 %v503, %v502
      %v556 = vpack.c.b16 %v505, %v504
      %v557 = vpack.c.b16 %v507, %v506
      %v558 = vpack.c.b16 %v509, %v508
      %v559 = vpack.c.b16 %v511, %v510
      %v560 = vpack.c.b16 %v513, %v512
      %v561 = vpack.c.b16 %v515, %v514
      %v562 = vpack.c.b16 %v517, %v516
      %v563 = vpack.c.b16 %v519, %v518
      %v564 = vpack.c.b16 %v521, %v520
      %v565 = vpack.c.b16 %v523, %v522
      %v566 = vpack.c.b16 %v525, %v524
      %v567 = vpack.c.b16 %v527, %v526
      %v568 = vpack.c.b16 %v529, %v528
      %v569 = vpack.c.b16 %v531, %v530
      %v570 = vpack.c.b16 %v533, %v532
      %v571 = vpack.c.b16 %v535, %v534
      %v572 = vpack.c.b16 %v537, %v536
      %v573 = vpack.c.b16 %v539, %v538
      %v574 = vpack.c.b16 %v541, %v540
      %v575 = vpack.c.b16 %v543, %v542
      %608 = vmatprep.subr.bf16.mxu0 0
      %609 = vmatpush1.bf16.msra.mxu0 %v551
      %610 = vmatprep.subr.bf16.mxu0 0
      %611 = vmatpush1.bf16.msra.mxu0 %v550
      %612 = vmatprep.subr.bf16.mxu0 0
      %613 = vmatpush1.bf16.msra.mxu0 %v549
      %614 = vmatprep.subr.bf16.mxu0 0
      %615 = vmatpush1.bf16.msra.mxu0 %v548
      %616 = vmatprep.subr.bf16.mxu0 0
      %617 = vmatpush1.bf16.msra.mxu0 %v547
      %618 = vmatprep.subr.bf16.mxu0 0
      %619 = vmatpush1.bf16.msra.mxu0 %v546
      %620 = vmatprep.subr.bf16.mxu0 0
      %621 = vmatpush1.bf16.msra.mxu0 %v545
      %622 = vmatprep.subr.bf16.mxu0 0
      %623 = vmatpush1.bf16.msra.mxu0 %v544
      %624 = vmatprep.subr.bf16.mxu0 0
      %625 = vmatpush2.bf16.msra.mxu0 %v559
      %626 = vmatprep.subr.bf16.mxu0 0
      %627 = vmatpush2.bf16.msra.mxu0 %v558
      %628 = vmatprep.subr.bf16.mxu0 0
      %629 = vmatpush2.bf16.msra.mxu0 %v557
      %630 = vmatprep.subr.bf16.mxu0 0
      %631 = vmatpush2.bf16.msra.mxu0 %v556
      %632 = vmatprep.subr.bf16.mxu0 0
      %633 = vmatpush2.bf16.msra.mxu0 %v555
      %634 = vmatprep.subr.bf16.mxu0 0
      %635 = vmatpush2.bf16.msra.mxu0 %v554
      %636 = vmatprep.subr.bf16.mxu0 0
      %637 = vmatpush2.bf16.msra.mxu0 %v553
      %638 = vmatprep.subr.bf16.mxu0 0
      %639 = vmatpush2.bf16.msra.mxu0 %v552
      %640 = vmatprep.mubr.bf16.mxu0 %v385
      %641 = vmatmul.mubr.bf16.gmra.mxu0 %v384
      %v642 = vpop.f32.mrf.mxu0
      %v643 = vadd.f32 %v299, %v642
      %v644 = vpop.f32.mrf.mxu0
      %v645 = vpop.f32.mrf.mxu0
      %v646 = vadd.f32 %v304, %v645
      %v647 = vpop.f32.mrf.mxu0
      %648 = vmatprep.mubr.bf16.mxu0 %v389
      %649 = vmatmul.mubr.bf16.gmra.mxu0 %v388
      %v650 = vpop.f32.mrf.mxu0
      %v651 = vadd.f32 %v309, %v650
      %v652 = vpop.f32.mrf.mxu0
      %v653 = vpop.f32.mrf.mxu0
      %v654 = vadd.f32 %v314, %v653
      %v655 = vpop.f32.mrf.mxu0
      %656 = vmatprep.mubr.bf16.mxu0 %v393
      %657 = vmatmul.mubr.bf16.gmra.mxu0 %v392
      %v658 = vpop.f32.mrf.mxu0
      %v659 = vadd.f32 %v319, %v658
      %v660 = vpop.f32.mrf.mxu0
      %v661 = vpop.f32.mrf.mxu0
      %v662 = vadd.f32 %v324, %v661
      %v663 = vpop.f32.mrf.mxu0
      %664 = vmatprep.mubr.bf16.mxu0 %v397
      %665 = vmatmul.mubr.bf16.gmra.mxu0 %v396
      %v666 = vpop.f32.mrf.mxu0
      %v667 = vadd.f32 %v329, %v666
      %v668 = vpop.f32.mrf.mxu0
      %v669 = vpop.f32.mrf.mxu0
      %v670 = vadd.f32 %v334, %v669
      %v671 = vpop.f32.mrf.mxu0
      %672 = vdwg.mxu0
      %673 = vmatprep.subr.bf16.mxu0 0
      %674 = vmatpush1.bf16.msra.mxu0 %v567
      %675 = vmatprep.subr.bf16.mxu0 0
      %676 = vmatpush1.bf16.msra.mxu0 %v566
      %677 = vmatprep.subr.bf16.mxu0 0
      %678 = vmatpush1.bf16.msra.mxu0 %v565
      %679 = vmatprep.subr.bf16.mxu0 0
      %680 = vmatpush1.bf16.msra.mxu0 %v564
      %681 = vmatprep.subr.bf16.mxu0 0
      %682 = vmatpush1.bf16.msra.mxu0 %v563
      %683 = vmatprep.subr.bf16.mxu0 0
      %684 = vmatpush1.bf16.msra.mxu0 %v562
      %685 = vmatprep.subr.bf16.mxu0 0
      %686 = vmatpush1.bf16.msra.mxu0 %v561
      %687 = vmatprep.subr.bf16.mxu0 0
      %688 = vmatpush1.bf16.msra.mxu0 %v560
      %689 = vmatprep.subr.bf16.mxu0 0
      %690 = vmatpush2.bf16.msra.mxu0 %v575
      %691 = vmatprep.subr.bf16.mxu0 0
      %692 = vmatpush2.bf16.msra.mxu0 %v574
      %693 = vmatprep.subr.bf16.mxu0 0
      %694 = vmatpush2.bf16.msra.mxu0 %v573
      %695 = vmatprep.subr.bf16.mxu0 0
      %696 = vmatpush2.bf16.msra.mxu0 %v572
      %697 = vmatprep.subr.bf16.mxu0 0
      %698 = vmatpush2.bf16.msra.mxu0 %v571
      %699 = vmatprep.subr.bf16.mxu0 0
      %700 = vmatpush2.bf16.msra.mxu0 %v570
      %701 = vmatprep.subr.bf16.mxu0 0
      %702 = vmatpush2.bf16.msra.mxu0 %v569
      %703 = vmatprep.subr.bf16.mxu0 0
      %704 = vmatpush2.bf16.msra.mxu0 %v568
      %705 = vmatprep.mubr.bf16.mxu0 %v387
      %706 = vmatmul.mubr.bf16.gmra.mxu0 %v386
      %v707 = vpop.f32.mrf.mxu0
      %v708 = vadd.f32 %v643, %v707
      %v709 = vpop.f32.mrf.mxu0
      %v710 = vpop.f32.mrf.mxu0
      %v711 = vadd.f32 %v646, %v710
      %v712 = vpop.f32.mrf.mxu0
      %713 = vmatprep.mubr.bf16.mxu0 %v391
      %714 = vmatmul.mubr.bf16.gmra.mxu0 %v390
      %v715 = vpop.f32.mrf.mxu0
      %v716 = vadd.f32 %v651, %v715
      %v717 = vpop.f32.mrf.mxu0
      %v718 = vpop.f32.mrf.mxu0
      %v719 = vadd.f32 %v654, %v718
      %v720 = vpop.f32.mrf.mxu0
      %721 = vmatprep.mubr.bf16.mxu0 %v395
      %722 = vmatmul.mubr.bf16.gmra.mxu0 %v394
      %v723 = vpop.f32.mrf.mxu0
      %v724 = vadd.f32 %v659, %v723
      %v725 = vpop.f32.mrf.mxu0
      %v726 = vpop.f32.mrf.mxu0
      %v727 = vadd.f32 %v662, %v726
      %v728 = vpop.f32.mrf.mxu0
      %729 = vmatprep.mubr.bf16.mxu0 %v399
      %730 = vmatmul.mubr.bf16.gmra.mxu0 %v398
      %v731 = vpop.f32.mrf.mxu0
      %v732 = vadd.f32 %v667, %v731
      %v733 = vpop.f32.mrf.mxu0
      %v734 = vpop.f32.mrf.mxu0
      %v735 = vadd.f32 %v670, %v734
      %v736 = vpop.f32.mrf.mxu0
      %737 = vdwg.mxu0
      %v738 = vpack.c.bf16 %v711, %v708
      %v739 = vpack.c.bf16 %v719, %v716
      %v740 = vpack.c.bf16 %v727, %v724
      %v741 = vpack.c.bf16 %v735, %v732
      %v746 = vunpack.c.l.b16 %v738
      %v747 = vunpack.c.h.b16 %v738
      %v748 = vunpack.c.l.b16 %v739
      %v749 = vunpack.c.h.b16 %v739
      %v750 = vunpack.c.l.b16 %v740
      %v751 = vunpack.c.h.b16 %v740
      %v752 = vunpack.c.l.b16 %v741
      %v753 = vunpack.c.h.b16 %v741
      %v754 = vpack.c.b16 %v746, %v746
      %v755 = vpack.c.b16 %v747, %v747
      %v756 = vpack.c.b16 %v748, %v748
      %v757 = vpack.c.b16 %v749, %v749
      %v758 = vpack.c.b16 %v750, %v750
      %v759 = vpack.c.b16 %v751, %v751
      %v760 = vpack.c.b16 %v752, %v752
      %v761 = vpack.c.b16 %v753, %v753
      %vm770 = vcmask 125952
      %771 = vst.msk [vmem:[%s206] sm:$0xf] %vm770, %v754
      %772 = vst.msk [vmem:[%s206 + $0x4] sm:$0xf] %vm770, %v755
      %773 = vst.msk [vmem:[%s206 + $0x8] sm:$0xf] %vm770, %v756
      %774 = vst.msk [vmem:[%s206 + $0xc] sm:$0xf] %vm770, %v757
      %775 = vst.msk [vmem:[%s206 + $0x10] sm:$0xf] %vm770, %v758
      %776 = vst.msk [vmem:[%s206 + $0x14] sm:$0xf] %vm770, %v759
      %777 = vst.msk [vmem:[%s206 + $0x18] sm:$0xf] %vm770, %v760
      %778 = vst.msk [vmem:[%s206 + $0x1c] sm:$0xf] %vm770, %v761
      %p779 = scmp.lt.s32.totalorder %s18, 1
      %s780 = scalar_select %p779, %s18, 1
      %p781 = scmp.lt.s32.totalorder %s19, 1
      %s782 = scalar_select %p781, %s19, 1
      %s783 = smul.addr %s782, 8
      %s784 = smul.addr %s780, 16
      %s785 = sadd.s32 %s783, %s784
      %s786 = smul.addr %s785, 4
      %s787 = scalar_lea.vmem %s3, %s786
      // Predicated region
      $region33: #{dssa_forward.4} parent=31 // pred_check
        %p788 = pneg %p116
      $region34: #{dssa_forward.4} parent=31 // pred_check_branch
        %790 = sbr.rel (%p788) target = $region36
      $region35: #{dssa_forward.4} parent=31 // pred_region
        _
      $region36: #{dssa_forward.4} parent=31 // pred_fallthru
        _
    $region32: #{dssa_forward.4} parent=5 // pred_fallthru
      _
    %p791 = scmp.le.s32.totalorder 2, %s9
    // Predicated region
    $region37: #{dssa_forward.4} parent=5 // pred_check
      %p792 = pneg %p791
    $region38: #{dssa_forward.4} parent=5 // pred_check_branch
      %794 = sbr.rel (%p792) target = $region40
    $region39: #{dssa_forward.4} parent=5 // pred_region
      %s795 = ssub.s32 %s9, 2
      // Predicated region
      $region41: #{dssa_forward.4} parent=39 // pred_check
        %p796 = pneg %p122
      $region42: #{dssa_forward.4} parent=39 // pred_check_branch
        %798 = sbr.rel (%p796) target = $region44
      $region43: #{dssa_forward.4} parent=39 // pred_region
        %p799 = scmp.lt.s32.totalorder %s20, 1
        %s800 = scalar_select %p799, %s20, 1
        %p801 = scmp.lt.s32.totalorder %s21, 1
        %s802 = scalar_select %p801, %s21, 1
        %s803 = smul.addr %s802, 8
        %s804 = smul.addr %s800, 16
        %s805 = sadd.s32 %s803, %s804
        %s806 = smul.addr %s805, 4
        %s807 = scalar_lea.vmem %s3, %s806
      $region44: #{dssa_forward.4} parent=39 // pred_fallthru
        _
    $region40: #{dssa_forward.4} parent=5 // pred_fallthru
      _
  $region6: #{dssa_forward.4} parent=0 // loop_footer
    %s13 = sadd.s32 1, %s9
  $region7: #{dssa_forward.4} parent=0 // loop_footer_branch
    %8 = sbr.rel target = $region3
  $region8: #{dssa_forward.4} parent=0 // loop_exit
    _

// kernel: dssa_forward.5
$region0: #{dssa_forward.5}
  #allocation0 [shape = 'u32[]', space=smem, size = 0x4, offset = 0x4, fixed_abs, tag = 'smem constant byte address 0x4 - core index']
  #allocation1 [shape = 'u32[144,128]{1,0:T(1,128)}', space=vmem, size = 0x12000, scoped, tag = 'internal scratch']
  #allocation2 [shape = 'f32[32,128]{1,0:T(8,128)}', space=vmem, size = 0x4000, scoped, tag = 'scratch operand']
  #allocation3 [shape = 'f32[4,16,128]{2,1,0:T(8,128)}', space=vmem, size = 0x8000, scoped, tag = 'scratch operand']
  #allocation4 [shape = 'f32[32,128]{1,0:T(8,128)}', space=vmem, size = 0x4000, scoped, tag = 'scratch operand']
  #allocation5 [shape = 'f32[32,128]{1,0:T(8,128)}', space=vmem, size = 0x4000, scoped, tag = 'scratch operand']
  %s0 = inlined_call_operand.vmem [shape: f32[2,2,32,256], index: 0, kind: input, shape index: {}]
  %s1 = inlined_call_operand.vmem [shape: bf16[2,2,4,16,16], index: 1, kind: input, shape index: {}]
  %s2 = inlined_call_operand.vmem [shape: bf16[32,32], index: 2, kind: input, shape index: {}]
  %s3 = inlined_call_operand.vmem [shape: f32[32,1], index: 3, kind: input, shape index: {}]
  %s4 = inlined_call_operand.vmem [shape: f32[2,2,32,256], index: 4, kind: output, shape index: {}]
  %s5 = sld [smem:[#allocation0]]
  $region125: #{dssa_forward.5} parent=0
    _
  %s7 = ssub.s32 1, %s5
  %s8 = scalar_select 0, %s7, %s5
  $region1: #{dssa_forward.5} parent=0
    #allocation6 [shape = 'u8[32768]{0}', space=vmem, size = 0x8000, scoped, tag = 'input window, operand 0']
    #allocation7 [shape = 'u8[32768]{0}', space=vmem, size = 0x8000, scoped, tag = 'output window, operand 0']
    loop: start=0, step=1, limit=10
    $region2: #{dssa_forward.5} parent=1 // loop_pre_header
      _
    $region3: #{dssa_forward.5} parent=1 // loop_header
      %s10 = sphi 0, %s14
      %p11 = scmp.ge.s32.totalorder %s10, 10
      %s17 = sphi 0, %s36
      %s18 = sphi 0, %s32
      %s19 = sphi 0, %s28
      %s20 = sphi 0, %s17
      %s21 = sphi 0, %s18
      %s22 = sphi 0, %s19
      %s23 = sphi 0, %s20
      %s24 = sphi 0, %s21
      %s25 = sphi 0, %s22
      %s43 = sphi 0, %s45
      %s46 = sphi 0, %s43
      %s47 = sphi 0, %s46
      %s63 = sphi 0, %s47
      %s71 = sphi 0, %s73
      %s74 = sphi 0, %s71
      %s75 = sphi 0, %s74
      %s91 = sphi 0, %s75
      %s95 = sphi 0, %s95
      %s97 = sphi 0, %s95
      %s98 = sphi 0, %s97
      %s112 = sphi 0, %s98
      %s116 = sphi 0, %s116
      %s118 = sphi 0, %s116
      %s119 = sphi 0, %s118
      %s133 = sphi 0, %s119
      %s143 = sphi 0, %s145
      %s146 = sphi 0, %s143
      %s147 = sphi 0, %s146
      %s163 = sphi 0, %s147
    $region4: #{dssa_forward.5} parent=1 // loop_header_branch
      %13 = sbr.rel (%p11) target = $region8
    $region5: #{dssa_forward.5} parent=1 // loop_body
      %s15 = ssub.s32 %s10, 1
      %s16 = ssub.s32 %s10, 2
      %s26 = sadd.s32 1, %s19
      %p27 = scmp.ge.s32.totalorder %s26, 2
      %s28 = scalar_select %p27, 0, %s26
      %s29 = sadd.s32 1, %s18
      %s30 = scalar_select %p27, %s29, %s18
      %p31 = scmp.ge.s32.totalorder %s30, 2
      %s32 = scalar_select %p31, 0, %s30
      %s33 = sadd.s32 1, %s17
      %s34 = scalar_select %p31, %s33, %s17
      %p35 = scmp.ge.s32.totalorder %s34, 2
      %s36 = scalar_select %p35, 0, %s34
      %s37 = ssub.s32 %s19, %s28
      %s38 = ssub.s32 %s17, %s36
      %s39 = sor.u32 %s37, %s38
      %s40 = ssub.s32 %s18, %s32
      %s41 = sor.u32 %s39, %s40
      %p42 = scmp.eq.s32.totalorder %s41, 0
      %s44 = sadd.s32 %s43, 1
      %s45 = scalar_select %p42, %s43, %s44
      %p48 = pneg %p42
      %p49 = scmp.eq.s32.totalorder %s10, 7
      %p50 = por %p48, %p49
      %p51 = scmp.ne.s32.totalorder %s43, %s46
      %p52 = scmp.eq.s32.totalorder %s10, 0
      %p53 = por %p51, %p52
      %p54 = scmp.ne.s32.totalorder %s43, %s46
      %p55 = scmp.eq.s32.totalorder %s15, 7
      %p56 = por %p54, %p55
      %p57 = scmp.ne.s32.totalorder %s46, %s47
      %p58 = scmp.eq.s32.totalorder %s15, 0
      %p59 = por %p57, %p58
      %p60 = scmp.ne.s32.totalorder %s46, %s47
      %p61 = scmp.eq.s32.totalorder %s16, 7
      %p62 = por %p60, %p61
      %p64 = scmp.ne.s32.totalorder %s47, %s63
      %p65 = scmp.eq.s32.totalorder %s16, 0
      %p66 = por %p64, %p65
      %s67 = ssub.s32 %s19, %s28
      %s68 = ssub.s32 %s17, %s36
      %s69 = sor.u32 %s67, %s68
      %p70 = scmp.eq.s32.totalorder %s69, 0
      %s72 = sadd.s32 %s71, 1
      %s73 = scalar_select %p70, %s71, %s72
      %p76 = pneg %p70
      %p77 = scmp.eq.s32.totalorder %s10, 7
      %p78 = por %p76, %p77
      %p79 = scmp.ne.s32.totalorder %s71, %s74
      %p80 = scmp.eq.s32.totalorder %s10, 0
      %p81 = por %p79, %p80
      %p82 = scmp.ne.s32.totalorder %s71, %s74
      %p83 = scmp.eq.s32.totalorder %s15, 7
      %p84 = por %p82, %p83
      %p85 = scmp.ne.s32.totalorder %s74, %s75
      %p86 = scmp.eq.s32.totalorder %s15, 0
      %p87 = por %p85, %p86
      %p88 = scmp.ne.s32.totalorder %s74, %s75
      %p89 = scmp.eq.s32.totalorder %s16, 7
      %p90 = por %p88, %p89
      %p92 = scmp.ne.s32.totalorder %s75, %s91
      %p93 = scmp.eq.s32.totalorder %s16, 0
      %p94 = por %p92, %p93
      %s96 = sadd.s32 %s95, 1
      %p99 = scmp.eq.s32.totalorder %s10, 7
      %p100 = scmp.ne.s32.totalorder %s95, %s97
      %p101 = scmp.eq.s32.totalorder %s10, 0
      %p102 = por %p100, %p101
      %p103 = scmp.ne.s32.totalorder %s95, %s97
      %p104 = scmp.eq.s32.totalorder %s15, 7
      %p105 = por %p103, %p104
      %p106 = scmp.ne.s32.totalorder %s97, %s98
      %p107 = scmp.eq.s32.totalorder %s15, 0
      %p108 = por %p106, %p107
      %p109 = scmp.ne.s32.totalorder %s97, %s98
      %p110 = scmp.eq.s32.totalorder %s16, 7
      %p111 = por %p109, %p110
      %p113 = scmp.ne.s32.totalorder %s98, %s112
      %p114 = scmp.eq.s32.totalorder %s16, 0
      %p115 = por %p113, %p114
      %s117 = sadd.s32 %s116, 1
      %p120 = scmp.eq.s32.totalorder %s10, 7
      %p121 = scmp.ne.s32.totalorder %s116, %s118
      %p122 = scmp.eq.s32.totalorder %s10, 0
      %p123 = por %p121, %p122
      %p124 = scmp.ne.s32.totalorder %s116, %s118
      %p125 = scmp.eq.s32.totalorder %s15, 7
      %p126 = por %p124, %p125
      %p127 = scmp.ne.s32.totalorder %s118, %s119
      %p128 = scmp.eq.s32.totalorder %s15, 0
      %p129 = por %p127, %p128
      %p130 = scmp.ne.s32.totalorder %s118, %s119
      %p131 = scmp.eq.s32.totalorder %s16, 7
      %p132 = por %p130, %p131
      %p134 = scmp.ne.s32.totalorder %s119, %s133
      %p135 = scmp.eq.s32.totalorder %s16, 0
      %p136 = por %p134, %p135
      %s137 = ssub.s32 %s19, %s28
      %s138 = ssub.s32 %s17, %s36
      %s139 = sor.u32 %s137, %s138
      %s140 = ssub.s32 %s18, %s32
      %s141 = sor.u32 %s139, %s140
      %p142 = scmp.eq.s32.totalorder %s141, 0
      %s144 = sadd.s32 %s143, 1
      %s145 = scalar_select %p142, %s143, %s144
      %p148 = pneg %p142
      %p149 = scmp.eq.s32.totalorder %s10, 7
      %p150 = por %p148, %p149
      %p151 = scmp.ne.s32.totalorder %s143, %s146
      %p152 = scmp.eq.s32.totalorder %s10, 0
      %p153 = por %p151, %p152
      %p154 = scmp.ne.s32.totalorder %s143, %s146
      %p155 = scmp.eq.s32.totalorder %s15, 7
      %p156 = por %p154, %p155
      %p157 = scmp.ne.s32.totalorder %s146, %s147
      %p158 = scmp.eq.s32.totalorder %s15, 0
      %p159 = por %p157, %p158
      %p160 = scmp.ne.s32.totalorder %s146, %s147
      %p161 = scmp.eq.s32.totalorder %s16, 7
      %p162 = por %p160, %p161
      %p164 = scmp.ne.s32.totalorder %s147, %s163
      %p165 = scmp.eq.s32.totalorder %s16, 0
      %p166 = por %p164, %p165
      %p167 = scmp.le.s32.totalorder 1, %s10
      %p168 = scmp.lt.s32.totalorder %s10, 9
      %p169 = pnand %p167, %p168
      %p170 = pneg %p169
      // Predicated region
      $region9: #{dssa_forward.5} parent=5 // pred_check
        _
      $region10: #{dssa_forward.5} parent=5 // pred_check_branch
        %172 = sbr.rel (%p169) target = $region12
      $region11: #{dssa_forward.5} parent=5 // pred_region
        %s173 = ssub.s32 %s10, 1
        // Predicated region
        $region13: #{dssa_forward.5} parent=11 // pred_check
          %p174 = pneg %p108
        $region14: #{dssa_forward.5} parent=11 // pred_check_branch
          %176 = sbr.rel (%p174) target = $region16
        $region15: #{dssa_forward.5} parent=11 // pred_region
          _
        $region16: #{dssa_forward.5} parent=11 // pred_fallthru
          _
        // Predicated region
        $region17: #{dssa_forward.5} parent=11 // pred_check
          %p177 = pneg %p129
        $region18: #{dssa_forward.5} parent=11 // pred_check_branch
          %179 = sbr.rel (%p177) target = $region20
        $region19: #{dssa_forward.5} parent=11 // pred_region
          _
        $region20: #{dssa_forward.5} parent=11 // pred_fallthru
          _
      $region12: #{dssa_forward.5} parent=5 // pred_fallthru
        _
      %p180 = scmp.lt.s32.totalorder %s10, 8
      // Predicated region
      $region21: #{dssa_forward.5} parent=5 // pred_check
        %p181 = pneg %p180
      $region22: #{dssa_forward.5} parent=5 // pred_check_branch
        %183 = sbr.rel (%p181) target = $region24
      $region23: #{dssa_forward.5} parent=5 // pred_region
        // Predicated region
        $region25: #{dssa_forward.5} parent=23 // pred_check
          %p184 = pneg %p53
        $region26: #{dssa_forward.5} parent=23 // pred_check_branch
          %186 = sbr.rel (%p184) target = $region28
        $region27: #{dssa_forward.5} parent=23 // pred_region
          %s187 = sand.u32 %s43, 1
          %s188 = sand.u32 %s43, 1
          %s189 = smul.addr %s188, 32
          %s190 = scalar_lea.vmem [#allocation6], %s189
          %s191 = smul.addr %s17, 8
          %s192 = sadd.s32 %s18, %s191
          %s193 = smul.addr %s19, 16
          %s194 = sadd.s32 %s192, %s193
          %s195 = smul.addr %s194, 8
          %s196 = scalar_lea.vmem %s0, %s195
          // Predicated region
          $region29: #{dssa_forward.5} parent=27 // pred_check
            _
          $region30: #{dssa_forward.5} parent=27 // pred_check_branch
            %198 = sbr.rel (0) target = $region32
          $region31: #{dssa_forward.5} parent=27 // pred_region
            // Predicated region
            $region33: #{dssa_forward.5} parent=31 // pred_check
              _
            $region34: #{dssa_forward.5} parent=31 // pred_check_branch
              %200 = sbr.rel (0) target = $region36
            $region35: #{dssa_forward.5} parent=31 // pred_region
              // Predicated region
              $region48: #{dssa_forward.5} parent=35 // pred_check
                _
              $region49: #{dssa_forward.5} parent=35 // pred_check_branch
                %222 = sbr.rel (0) target = $region51
              $region50: #{dssa_forward.5} parent=35 // pred_region
                loop: start=0, step=1, limit=1
                $region52: #{dssa_forward.5} parent=50 // loop_pre_header
                  _
                $region53: #{dssa_forward.5} parent=50 // loop_header
                  %s224 = sphi 0, %s228
                  %p225 = scmp.ge.s32.totalorder %s224, 1
                  %s229 = sphi %s196, %s196
                  %s230 = sphi %s190, %s190
                $region54: #{dssa_forward.5} parent=50 // loop_header_branch
                  %227 = sbr.rel (%p225) target = $region58
                $region55: #{dssa_forward.5} parent=50 // loop_body
                  %v231 = vld [vmem:[%s229] sm:$0xff]
                  %232 = vst [vmem:[%s230] sm:$0xff] %v231
                  %v233 = vld [vmem:[%s229 + $0x10] sm:$0xff]
                  %234 = vst [vmem:[%s230 + $0x8] sm:$0xff] %v233
                  %v235 = vld [vmem:[%s229 + $0x20] sm:$0xff]
                  %236 = vst [vmem:[%s230 + $0x10] sm:$0xff] %v235
                  %v237 = vld [vmem:[%s229 + $0x30] sm:$0xff]
                  %238 = vst [vmem:[%s230 + $0x18] sm:$0xff] %v237
                $region56: #{dssa_forward.5} parent=50 // loop_footer
                  %s228 = sadd.s32 1, %s224
                $region57: #{dssa_forward.5} parent=50 // loop_footer_branch
                  %223 = sbr.rel target = $region53
                $region58: #{dssa_forward.5} parent=50 // loop_exit
                  _
              $region51: #{dssa_forward.5} parent=35 // pred_fallthru
                _
              // Predicated region
              $region59: #{dssa_forward.5} parent=35 // pred_check
                _
              $region60: #{dssa_forward.5} parent=35 // pred_check_branch
                %240 = sbr.rel target = $region62
              $region61: #{dssa_forward.5} parent=35 // pred_region
                _
              $region62: #{dssa_forward.5} parent=35 // pred_fallthru
                _
            $region36: #{dssa_forward.5} parent=31 // pred_fallthru
              _
            // Predicated region
            $region37: #{dssa_forward.5} parent=31 // pred_check
              _
            $region38: #{dssa_forward.5} parent=31 // pred_check_branch
              %202 = sbr.rel target = $region40
            $region39: #{dssa_forward.5} parent=31 // pred_region
              %s204 = ssub.s32 256, 1
              loop: start=0, step=1, limit=1
              $region41: #{dssa_forward.5} parent=39 // loop_pre_header
                _
              $region42: #{dssa_forward.5} parent=39 // loop_header
                %s206 = sphi 0, %s210
                %p207 = scmp.ge.s32.totalorder %s206, 1
                %s211 = sphi %s196, %s196
                %s212 = sphi %s190, %s190
              $region43: #{dssa_forward.5} parent=39 // loop_header_branch
                %209 = sbr.rel (%p207) target = $region47
              $region44: #{dssa_forward.5} parent=39 // loop_body
                %v213 = vld [vmem:[%s211] sm:%s204]
                %214 = vst [vmem:[%s212] sm:%s204] %v213
                %v215 = vld [vmem:[%s211 + $0x10] sm:%s204]
                %216 = vst [vmem:[%s212 + $0x8] sm:%s204] %v215
                %v217 = vld [vmem:[%s211 + $0x20] sm:%s204]
                %218 = vst [vmem:[%s212 + $0x10] sm:%s204] %v217
                %v219 = vld [vmem:[%s211 + $0x30] sm:%s204]
                %220 = vst [vmem:[%s212 + $0x18] sm:%s204] %v219
              $region45: #{dssa_forward.5} parent=39 // loop_footer
                %s210 = sadd.s32 1, %s206
              $region46: #{dssa_forward.5} parent=39 // loop_footer_branch
                %205 = sbr.rel target = $region42
              $region47: #{dssa_forward.5} parent=39 // loop_exit
                _
            $region40: #{dssa_forward.5} parent=31 // pred_fallthru
              _
          $region32: #{dssa_forward.5} parent=27 // pred_fallthru
            _
          %241 = vnop
        $region28: #{dssa_forward.5} parent=23 // pred_fallthru
          _
        // Predicated region
        $region63: #{dssa_forward.5} parent=23 // pred_check
          %p242 = pneg %p81
        $region64: #{dssa_forward.5} parent=23 // pred_check_branch
          %244 = sbr.rel (%p242) target = $region66
        $region65: #{dssa_forward.5} parent=23 // pred_region
          %p245 = scmp.lt.s32.totalorder %s19, 1
          %s246 = scalar_select %p245, %s19, 1
          %p247 = scmp.lt.s32.totalorder %s17, 1
          %s248 = scalar_select %p247, %s17, 1
          %s249 = smul.addr %s248, 8
          %s250 = smul.addr %s246, 16
          %s251 = sadd.s32 %s249, %s250
          %s252 = smul.addr %s251, 4
          %s253 = scalar_lea.vmem %s1, %s252
        $region66: #{dssa_forward.5} parent=23 // pred_fallthru
          _
      $region24: #{dssa_forward.5} parent=5 // pred_fallthru
        _
      %p254 = scmp.le.s32.totalorder 1, %s10
      %p255 = scmp.lt.s32.totalorder %s10, 9
      %p256 = pnand %p254, %p255
      %p257 = pneg %p256
      // Predicated region
      $region67: #{dssa_forward.5} parent=5 // pred_check
        _
      $region68: #{dssa_forward.5} parent=5 // pred_check_branch
        %259 = sbr.rel (%p256) target = $region70
      $region69: #{dssa_forward.5} parent=5 // pred_region
        %s260 = ssub.s32 %s10, 1
        %s261 = sand.u32 %s46, 1
        %s262 = sand.u32 %s46, 1
        %s263 = smul.addr %s262, 32
        %s264 = scalar_lea.vmem [#allocation6], %s263
        // Predicated region
        $region71: #{dssa_forward.5} parent=69 // pred_check
          %p265 = pneg %p59
        $region72: #{dssa_forward.5} parent=69 // pred_check_branch
          %267 = sbr.rel (%p265) target = $region74
        $region73: #{dssa_forward.5} parent=69 // pred_region
          _
        $region74: #{dssa_forward.5} parent=69 // pred_fallthru
          _
        %s268 = sand.u32 %s46, 1
        %s269 = sand.u32 %s46, 1
        %s270 = smul.addr %s269, 32
        %s271 = scalar_lea.vmem [#allocation6], %s270
        %p272 = pneg %p59
        %p273 = pneg %p56
        %p274 = scmp.lt.s32.totalorder %s22, 1
        %s275 = scalar_select %p274, %s22, 1
        %p276 = scmp.lt.s32.totalorder %s20, 1
        %s277 = scalar_select %p276, %s20, 1
        %s278 = smul.addr %s277, 8
        %s279 = smul.addr %s275, 16
        %s280 = sadd.s32 %s278, %s279
        %s281 = smul.addr %s280, 4
        %s282 = scalar_lea.vmem %s1, %s281
        %p283 = pneg %p87
        %p284 = pneg %p84
        %p285 = pneg %p108
        %p286 = pneg %p105
        %p287 = pneg %p129
        %p288 = pneg %p126
        %p289 = pneg %p159
        %p290 = pneg %p156
        %s291 = sand.u32 %s146, 1
        %s292 = sand.u32 %s146, 1
        %s293 = smul.addr %s292, 32
        %s294 = scalar_lea.vmem [#allocation7], %s293
        %p295 = scmp.lt.s32.totalorder %s22, 1
        %s296 = scalar_select %p295, %s22, 1
        %p297 = scmp.lt.s32.totalorder %s20, 1
        %s298 = scalar_select %p297, %s20, 1
        %s299 = smul.addr %s298, 8
        %s300 = smul.addr %s296, 16
        %s301 = sadd.s32 %s299, %s300
        %s302 = smul.addr %s301, 4
        %s303 = scalar_lea.vmem %s1, %s302
        %p305 = scmp.eq.s32.totalorder %s22, 0
        // Predicated region
        $region75: #{dssa_forward.5} parent=69 // pred_check
          %p306 = pneg %p305
        $region76: #{dssa_forward.5} parent=69 // pred_check_branch
          %308 = sbr.rel (%p306) target = $region78
        $region77: #{dssa_forward.5} parent=69 // pred_region
          %309 = vst [vmem:[#allocation2] sm:$0xff] 0.0
          %310 = vst [vmem:[#allocation2 + $0x8] sm:$0xff] 0.0
          %311 = vst [vmem:[#allocation2 + $0x10] sm:$0xff] 0.0
          %312 = vst [vmem:[#allocation2 + $0x18] sm:$0xff] 0.0
          %313 = vst [vmem:[#allocation3] sm:$0xff] 0.0
          %314 = vst [vmem:[#allocation3 + $0x8] sm:$0xff] 0.0
          %315 = vst [vmem:[#allocation3 + $0x10] sm:$0xff] 0.0
          %316 = vst [vmem:[#allocation3 + $0x18] sm:$0xff] 0.0
          %317 = vst [vmem:[#allocation3 + $0x20] sm:$0xff] 0.0
          %318 = vst [vmem:[#allocation3 + $0x28] sm:$0xff] 0.0
          %319 = vst [vmem:[#allocation3 + $0x30] sm:$0xff] 0.0
          %320 = vst [vmem:[#allocation3 + $0x38] sm:$0xff] 0.0
          %321 = vst [vmem:[#allocation5] sm:$0xff] 0.0
          %322 = vst [vmem:[#allocation5 + $0x8] sm:$0xff] 0.0
          %323 = vst [vmem:[#allocation5 + $0x10] sm:$0xff] 0.0
          %324 = vst [vmem:[#allocation5 + $0x18] sm:$0xff] 0.0
        $region78: #{dssa_forward.5} parent=69 // pred_fallthru
          _
        %v325 = vld [vmem:[%s264] sm:$0xff]
        %v326 = vld [vmem:[%s264 + $0x8] sm:$0xff]
        %v327 = vld [vmem:[%s264 + $0x10] sm:$0xff]
        %v328 = vld [vmem:[%s264 + $0x18] sm:$0xff]
        %v329 = vld [vmem:[#allocation2] sm:$0xff]
        %v330 = vld [vmem:[#allocation2 + $0x8] sm:$0xff]
        %v331 = vld [vmem:[#allocation2 + $0x10] sm:$0xff]
        %v332 = vld [vmem:[#allocation2 + $0x18] sm:$0xff]
        %v333 = vsub.f32 %v325, %v329
        %v334 = vsub.f32 %v326, %v330
        %v335 = vsub.f32 %v327, %v331
        %v336 = vsub.f32 %v328, %v332
        %v337 = vmul.f32 %v333, 0.5
        %v338 = vmul.f32 %v334, 0.5
        %v339 = vmul.f32 %v335, 0.5
        %v340 = vmul.f32 %v336, 0.5
        %v341 = vadd.f32 %v329, %v337
        %v342 = vadd.f32 %v330, %v338
        %v343 = vadd.f32 %v331, %v339
        %v344 = vadd.f32 %v332, %v340
        %vm345 = vcmp.ge.f32.partialorder %v341, 1.0
        %vm346 = vcmp.ge.f32.partialorder %v342, 1.0
        %vm347 = vcmp.ge.f32.partialorder %v343, 1.0
        %vm348 = vcmp.ge.f32.partialorder %v344, 1.0
        %v349 = vsel %vm345, 0.0, %v341
        %v350 = vsel %vm346, 0.0, %v342
        %v351 = vsel %vm347, 0.0, %v343
        %v352 = vsel %vm348, 0.0, %v344
        %353 = vst [vmem:[#allocation2] sm:$0xff] %v349
        %354 = vst [vmem:[#allocation2 + $0x8] sm:$0xff] %v350
        %355 = vst [vmem:[#allocation2 + $0x10] sm:$0xff] %v351
        %356 = vst [vmem:[#allocation2 + $0x18] sm:$0xff] %v352
        %v357 = vsel %vm345, 1, 0
        %v358 = vsel %vm346, 1, 0
        %v359 = vsel %vm347, 1, 0
        %v360 = vsel %vm348, 1, 0
        %v361 = vcvt.s32.f32 %v357
        %v362 = vcvt.s32.f32 %v358
        %v363 = vcvt.s32.f32 %v359
        %v364 = vcvt.s32.f32 %v360
        %v365 = vld [vmem:[%s303] sm:$0xf]
        %v366 = vld [vmem:[%s303 + $0x4] sm:$0xf]
        %v367 = vpack.c.bf16 %v361, %v361
        %368 = vxpose.xlu0.c.b16.start [1/8] %v365, 128
        %369 = vxpose.xlu0.c.b16.cont [2/8] 0, 128
        %370 = vxpose.xlu0.c.b16.cont [3/8] 0, 128
        %371 = vxpose.xlu0.c.b16.cont [4/8] 0, 128
        %372 = vxpose.xlu0.c.b16.cont [5/8] 0, 128
        %373 = vxpose.xlu0.c.b16.cont [6/8] 0, 128
        %374 = vxpose.xlu0.c.b16.cont [7/8] 0, 128
        %375 = vxpose.xlu0.c.b16.end [8/8] 0, 128
        %v376 = vpop.trf.xlu0
        %v377 = vpop.trf.xlu0
        %v378 = vpop.trf.xlu0
        %v379 = vpop.trf.xlu0
        %v380 = vpop.trf.xlu0
        %v381 = vpop.trf.xlu0
        %v382 = vpop.trf.xlu0
        %v383 = vpop.trf.xlu0
        %vm384 = vcmask 64512
        %v386 = vsel %vm384, %v376, 0
        %vm388 = vcmask 1043456
        %v390 = vsel %vm388, %v367, 0
        %392 = vmatprep.subr.bf16.mxu0 0
        %393 = vmatpush1.bf16.msra.mxu0 0
        %394 = vmatprep.subr.bf16.mxu0 0
        %395 = vmatpush1.bf16.msra.mxu0 0
        %396 = vmatprep.subr.bf16.mxu0 0
        %397 = vmatpush1.bf16.msra.mxu0 0
        %398 = vmatprep.subr.bf16.mxu0 0
        %399 = vmatpush1.bf16.msra.mxu0 0
        %400 = vmatprep.subr.bf16.mxu0 0
        %401 = vmatpush1.bf16.msra.mxu0 0
        %402 = vmatprep.subr.bf16.mxu0 0
        %403 = vmatpush1.bf16.msra.mxu0 0
        %404 = vmatprep.subr.bf16.mxu0 0
        %405 = vmatpush1.bf16.msra.mxu0 0
        %406 = vmatprep.subr.bf16.mxu0 0
        %407 = vmatpush1.bf16.msra.mxu0 %v390
        %408 = vmatprep.subr.bf16.mxu0 0
        %409 = vmatpush2.bf16.msra.mxu0 0
        %410 = vmatprep.subr.bf16.mxu0 0
        %411 = vmatpush2.bf16.msra.mxu0 0
        %412 = vmatprep.subr.bf16.mxu0 0
        %413 = vmatpush2.bf16.msra.mxu0 0
        %414 = vmatprep.subr.bf16.mxu0 0
        %415 = vmatpush2.bf16.msra.mxu0 0
        %416 = vmatprep.subr.bf16.mxu0 0
        %417 = vmatpush2.bf16.msra.mxu0 0
        %418 = vmatprep.subr.bf16.mxu0 0
        %419 = vmatpush2.bf16.msra.mxu0 0
        %420 = vmatprep.subr.bf16.mxu0 0
        %421 = vmatpush2.bf16.msra.mxu0 0
        %422 = vmatprep.subr.bf16.mxu0 0
        %423 = vmatpush2.bf16.msra.mxu0 0
        %424 = vmatprep.mubr.bf16.mxu0 0
        %425 = vmatmul.mubr.bf16.gmra.mxu0 %v386
        %v426 = vpop.f32.mrf.mxu0
        %v427 = vadd.f32 0.0, %v426
        %v428 = vpop.f32.mrf.mxu0
        %v429 = vpop.f32.mrf.mxu0
        %v430 = vadd.f32 0.0, %v429
        %v431 = vpop.f32.mrf.mxu0
        %432 = vdwg.mxu0
        %v433 = vld [vmem:[#allocation3] sm:$0xff]
        %v434 = vld [vmem:[#allocation3 + $0x8] sm:$0xff]
        %v435 = vsub.f32 %v427, %v433
        %v436 = vsub.f32 %v430, %v434
        %v437 = vmul.f32 %v435, 0.5
        %v438 = vmul.f32 %v436, 0.5
        %v439 = vadd.f32 %v433, %v437
        %v440 = vadd.f32 %v434, %v438
        %vm441 = vcmp.ge.f32.partialorder %v439, 1.0
        %vm442 = vcmp.ge.f32.partialorder %v440, 1.0
        %v443 = vsel %vm441, 0.0, %v439
        %v444 = vsel %vm442, 0.0, %v440
        %445 = vst [vmem:[#allocation3] sm:$0xff] %v443
        %446 = vst [vmem:[#allocation3 + $0x8] sm:$0xff] %v444
        %v447 = vsel %vm441, 1, 0
        %v448 = vsel %vm442, 1, 0
        %v449 = vcvt.s32.f32 %v447
        %v450 = vcvt.s32.f32 %v448
        %v451 = vpack.c.bf16 %v450, %v449
        %vm452 = vcmask 130048
        %v454 = vsel %vm452, %v366, 0
        %456 = vmatprep.subr.bf16.mxu0 0
        %457 = vmatpush1.bf16.msra.mxu0 0
        %458 = vmatprep.subr.bf16.mxu0 0
        %459 = vmatpush1.bf16.msra.mxu0 0
        %460 = vmatprep.subr.bf16.mxu0 0
        %461 = vmatpush1.bf16.msra.mxu0 0
        %462 = vmatprep.subr.bf16.mxu0 0
        %463 = vmatpush1.bf16.msra.mxu0 0
        %464 = vmatprep.subr.bf16.mxu0 0
        %465 = vmatpush1.bf16.msra.mxu0 0
        %466 = vmatprep.subr.bf16.mxu0 0
        %467 = vmatpush1.bf16.msra.mxu0 0
        %468 = vmatprep.subr.bf16.mxu0 0
        %469 = vmatpush1.bf16.msra.mxu0 0
        %470 = vmatprep.subr.bf16.mxu0 0
        %471 = vmatpush1.bf16.msra.mxu0 %v451
        %472 = vmatprep.subr.bf16.mxu0 0
        %473 = vmatpush2.bf16.msra.mxu0 0
        %474 = vmatprep.subr.bf16.mxu0 0
        %475 = vmatpush2.bf16.msra.mxu0 0
        %476 = vmatprep.subr.bf16.mxu0 0
        %477 = vmatpush2.bf16.msra.mxu0 0
        %478 = vmatprep.subr.bf16.mxu0 0
        %479 = vmatpush2.bf16.msra.mxu0 0
        %480 = vmatprep.subr.bf16.mxu0 0
        %481 = vmatpush2.bf16.msra.mxu0 0
        %482 = vmatprep.subr.bf16.mxu0 0
        %483 = vmatpush2.bf16.msra.mxu0 0
        %484 = vmatprep.subr.bf16.mxu0 0
        %485 = vmatpush2.bf16.msra.mxu0 0
        %486 = vmatprep.subr.bf16.mxu0 0
        %487 = vmatpush2.bf16.msra.mxu0 0
        %488 = vmatprep.mubr.bf16.mxu0 0
        %489 = vmatmul.mubr.bf16.gmra.mxu0 %v454
        %v490 = vpop.f32.mrf.mxu0
        %v491 = vadd.f32 0.0, %v490
        %v492 = vpop.f32.mrf.mxu0
        %v493 = vpop.f32.mrf.mxu0
        %v494 = vpop.f32.mrf.mxu0
        %495 = vdwg.mxu0
        %496 = vst [vmem:[#allocation4] sm:$0xff] %v491
        %s497 = scalar_lea.vmem %s303, 8
        %v498 = vld [vmem:[%s497] sm:$0xf]
        %v499 = vld [vmem:[%s497 + $0x4] sm:$0xf]
        %v500 = vpack.c.bf16 %v362, %v362
        %501 = vxpose.xlu0.c.b16.start [1/8] %v498, 128
        %502 = vxpose.xlu0.c.b16.cont [2/8] 0, 128
        %503 = vxpose.xlu0.c.b16.cont [3/8] 0, 128
        %504 = vxpose.xlu0.c.b16.cont [4/8] 0, 128
        %505 = vxpose.xlu0.c.b16.cont [5/8] 0, 128
        %506 = vxpose.xlu0.c.b16.cont [6/8] 0, 128
        %507 = vxpose.xlu0.c.b16.cont [7/8] 0, 128
        %508 = vxpose.xlu0.c.b16.end [8/8] 0, 128
        %v509 = vpop.trf.xlu0
        %v510 = vpop.trf.xlu0
        %v511 = vpop.trf.xlu0
        %v512 = vpop.trf.xlu0
        %v513 = vpop.trf.xlu0
        %v514 = vpop.trf.xlu0
        %v515 = vpop.trf.xlu0
        %v516 = vpop.trf.xlu0
        %v518 = vsel %vm384, %v509, 0
        %v521 = vsel %vm388, %v500, 0
        %523 = vmatprep.subr.bf16.mxu0 0
        %524 = vmatpush1.bf16.msra.mxu0 0
        %525 = vmatprep.subr.bf16.mxu0 0
        %526 = vmatpush1.bf16.msra.mxu0 0
        %527 = vmatprep.subr.bf16.mxu0 0
        %528 = vmatpush1.bf16.msra.mxu0 0
        %529 = vmatprep.subr.bf16.mxu0 0
        %530 = vmatpush1.bf16.msra.mxu0 0
        %531 = vmatprep.subr.bf16.mxu0 0
        %532 = vmatpush1.bf16.msra.mxu0 0
        %533 = vmatprep.subr.bf16.mxu0 0
        %534 = vmatpush1.bf16.msra.mxu0 0
        %535 = vmatprep.subr.bf16.mxu0 0
        %536 = vmatpush1.bf16.msra.mxu0 0
        %537 = vmatprep.subr.bf16.mxu0 0
        %538 = vmatpush1.bf16.msra.mxu0 %v521
        %539 = vmatprep.subr.bf16.mxu0 0
        %540 = vmatpush2.bf16.msra.mxu0 0
        %541 = vmatprep.subr.bf16.mxu0 0
        %542 = vmatpush2.bf16.msra.mxu0 0
        %543 = vmatprep.subr.bf16.mxu0 0
        %544 = vmatpush2.bf16.msra.mxu0 0
        %545 = vmatprep.subr.bf16.mxu0 0
        %546 = vmatpush2.bf16.msra.mxu0 0
        %547 = vmatprep.subr.bf16.mxu0 0
        %548 = vmatpush2.bf16.msra.mxu0 0
        %549 = vmatprep.subr.bf16.mxu0 0
        %550 = vmatpush2.bf16.msra.mxu0 0
        %551 = vmatprep.subr.bf16.mxu0 0
        %552 = vmatpush2.bf16.msra.mxu0 0
        %553 = vmatprep.subr.bf16.mxu0 0
        %554 = vmatpush2.bf16.msra.mxu0 0
        %555 = vmatprep.mubr.bf16.mxu0 0
        %556 = vmatmul.mubr.bf16.gmra.mxu0 %v518
        %v557 = vpop.f32.mrf.mxu0
        %v558 = vadd.f32 0.0, %v557
        %v559 = vpop.f32.mrf.mxu0
        %v560 = vpop.f32.mrf.mxu0
        %v561 = vadd.f32 0.0, %v560
        %v562 = vpop.f32.mrf.mxu0
        %563 = vdwg.mxu0
        %s564 = scalar_lea.vmem [#allocation3], 16
        %v565 = vld [vmem:[%s564] sm:$0xff]
        %v566 = vld [vmem:[%s564 + $0x8] sm:$0xff]
        %v567 = vsub.f32 %v558, %v565
        %v568 = vsub.f32 %v561, %v566
        %v569 = vmul.f32 %v567, 0.5
        %v570 = vmul.f32 %v568, 0.5
        %v571 = vadd.f32 %v565, %v569
        %v572 = vadd.f32 %v566, %v570
        %vm573 = vcmp.ge.f32.partialorder %v571, 1.0
        %vm574 = vcmp.ge.f32.partialorder %v572, 1.0
        %v575 = vsel %vm573, 0.0, %v571
        %v576 = vsel %vm574, 0.0, %v572
        %577 = vst [vmem:[%s564] sm:$0xff] %v575
        %578 = vst [vmem:[%s564 + $0x8] sm:$0xff] %v576
        %v579 = vsel %vm573, 1, 0
        %v580 = vsel %vm574, 1, 0
        %v581 = vcvt.s32.f32 %v579
        %v582 = vcvt.s32.f32 %v580
        %v583 = vpack.c.bf16 %v582, %v581
        %v585 = vsel %vm452, %v499, 0
        %587 = vmatprep.subr.bf16.mxu0 0
        %588 = vmatpush1.bf16.msra.mxu0 0
        %589 = vmatprep.subr.bf16.mxu0 0
        %590 = vmatpush1.bf16.msra.mxu0 0
        %591 = vmatprep.subr.bf16.mxu0 0
        %592 = vmatpush1.bf16.msra.mxu0 0
        %593 = vmatprep.subr.bf16.mxu0 0
        %594 = vmatpush1.bf16.msra.mxu0 0
        %595 = vmatprep.subr.bf16.mxu0 0
        %596 = vmatpush1.bf16.msra.mxu0 0
        %597 = vmatprep.subr.bf16.mxu0 0
        %598 = vmatpush1.bf16.msra.mxu0 0
        %599 = vmatprep.subr.bf16.mxu0 0
        %600 = vmatpush1.bf16.msra.mxu0 0
        %601 = vmatprep.subr.bf16.mxu0 0
        %602 = vmatpush1.bf16.msra.mxu0 %v583
        %603 = vmatprep.subr.bf16.mxu0 0
        %604 = vmatpush2.bf16.msra.mxu0 0
        %605 = vmatprep.subr.bf16.mxu0 0
        %606 = vmatpush2.bf16.msra.mxu0 0
        %607 = vmatprep.subr.bf16.mxu0 0
        %608 = vmatpush2.bf16.msra.mxu0 0
        %609 = vmatprep.subr.bf16.mxu0 0
        %610 = vmatpush2.bf16.msra.mxu0 0
        %611 = vmatprep.subr.bf16.mxu0 0
        %612 = vmatpush2.bf16.msra.mxu0 0
        %613 = vmatprep.subr.bf16.mxu0 0
        %614 = vmatpush2.bf16.msra.mxu0 0
        %615 = vmatprep.subr.bf16.mxu0 0
        %616 = vmatpush2.bf16.msra.mxu0 0
        %617 = vmatprep.subr.bf16.mxu0 0
        %618 = vmatpush2.bf16.msra.mxu0 0
        %619 = vmatprep.mubr.bf16.mxu0 0
        %620 = vmatmul.mubr.bf16.gmra.mxu0 %v585
        %v621 = vpop.f32.mrf.mxu0
        %v622 = vadd.f32 0.0, %v621
        %v623 = vpop.f32.mrf.mxu0
        %v624 = vpop.f32.mrf.mxu0
        %v625 = vpop.f32.mrf.mxu0
        %626 = vdwg.mxu0
        %627 = vst [vmem:[#allocation4 + $0x8] sm:$0xff] %v622
        %s628 = scalar_lea.vmem %s303, 16
        %v629 = vld [vmem:[%s628] sm:$0xf]
        %v630 = vld [vmem:[%s628 + $0x4] sm:$0xf]
        %v631 = vpack.c.bf16 %v363, %v363
        %632 = vxpose.xlu0.c.b16.start [1/8] %v629, 128
        %633 = vxpose.xlu0.c.b16.cont [2/8] 0, 128
        %634 = vxpose.xlu0.c.b16.cont [3/8] 0, 128
        %635 = vxpose.xlu0.c.b16.cont [4/8] 0, 128
        %636 = vxpose.xlu0.c.b16.cont [5/8] 0, 128
        %637 = vxpose.xlu0.c.b16.cont [6/8] 0, 128
        %638 = vxpose.xlu0.c.b16.cont [7/8] 0, 128
        %639 = vxpose.xlu0.c.b16.end [8/8] 0, 128
        %v640 = vpop.trf.xlu0
        %v641 = vpop.trf.xlu0
        %v642 = vpop.trf.xlu0
        %v643 = vpop.trf.xlu0
        %v644 = vpop.trf.xlu0
        %v645 = vpop.trf.xlu0
        %v646 = vpop.trf.xlu0
        %v647 = vpop.trf.xlu0
        %v649 = vsel %vm384, %v640, 0
        %v652 = vsel %vm388, %v631, 0
        %654 = vmatprep.subr.bf16.mxu0 0
        %655 = vmatpush1.bf16.msra.mxu0 0
        %656 = vmatprep.subr.bf16.mxu0 0
        %657 = vmatpush1.bf16.msra.mxu0 0
        %658 = vmatprep.subr.bf16.mxu0 0
        %659 = vmatpush1.bf16.msra.mxu0 0
        %660 = vmatprep.subr.bf16.mxu0 0
        %661 = vmatpush1.bf16.msra.mxu0 0
        %662 = vmatprep.subr.bf16.mxu0 0
        %663 = vmatpush1.bf16.msra.mxu0 0
        %664 = vmatprep.subr.bf16.mxu0 0
        %665 = vmatpush1.bf16.msra.mxu0 0
        %666 = vmatprep.subr.bf16.mxu0 0
        %667 = vmatpush1.bf16.msra.mxu0 0
        %668 = vmatprep.subr.bf16.mxu0 0
        %669 = vmatpush1.bf16.msra.mxu0 %v652
        %670 = vmatprep.subr.bf16.mxu0 0
        %671 = vmatpush2.bf16.msra.mxu0 0
        %672 = vmatprep.subr.bf16.mxu0 0
        %673 = vmatpush2.bf16.msra.mxu0 0
        %674 = vmatprep.subr.bf16.mxu0 0
        %675 = vmatpush2.bf16.msra.mxu0 0
        %676 = vmatprep.subr.bf16.mxu0 0
        %677 = vmatpush2.bf16.msra.mxu0 0
        %678 = vmatprep.subr.bf16.mxu0 0
        %679 = vmatpush2.bf16.msra.mxu0 0
        %680 = vmatprep.subr.bf16.mxu0 0
        %681 = vmatpush2.bf16.msra.mxu0 0
        %682 = vmatprep.subr.bf16.mxu0 0
        %683 = vmatpush2.bf16.msra.mxu0 0
        %684 = vmatprep.subr.bf16.mxu0 0
        %685 = vmatpush2.bf16.msra.mxu0 0
        %686 = vmatprep.mubr.bf16.mxu0 0
        %687 = vmatmul.mubr.bf16.gmra.mxu0 %v649
        %v688 = vpop.f32.mrf.mxu0
        %v689 = vadd.f32 0.0, %v688
        %v690 = vpop.f32.mrf.mxu0
        %v691 = vpop.f32.mrf.mxu0
        %v692 = vadd.f32 0.0, %v691
        %v693 = vpop.f32.mrf.mxu0
        %694 = vdwg.mxu0
        %s695 = scalar_lea.vmem [#allocation3], 32
        %v696 = vld [vmem:[%s695] sm:$0xff]
        %v697 = vld [vmem:[%s695 + $0x8] sm:$0xff]
        %v698 = vsub.f32 %v689, %v696
        %v699 = vsub.f32 %v692, %v697
        %v700 = vmul.f32 %v698, 0.5
        %v701 = vmul.f32 %v699, 0.5
        %v702 = vadd.f32 %v696, %v700
        %v703 = vadd.f32 %v697, %v701
        %vm704 = vcmp.ge.f32.partialorder %v702, 1.0
        %vm705 = vcmp.ge.f32.partialorder %v703, 1.0
        %v706 = vsel %vm704, 0.0, %v702
        %v707 = vsel %vm705, 0.0, %v703
        %708 = vst [vmem:[%s695] sm:$0xff] %v706
        %709 = vst [vmem:[%s695 + $0x8] sm:$0xff] %v707
        %v710 = vsel %vm704, 1, 0
        %v711 = vsel %vm705, 1, 0
        %v712 = vcvt.s32.f32 %v710
        %v713 = vcvt.s32.f32 %v711
        %v714 = vpack.c.bf16 %v713, %v712
        %v716 = vsel %vm452, %v630, 0
        %718 = vmatprep.subr.bf16.mxu0 0
        %719 = vmatpush1.bf16.msra.mxu0 0
        %720 = vmatprep.subr.bf16.mxu0 0
        %721 = vmatpush1.bf16.msra.mxu0 0
        %722 = vmatprep.subr.bf16.mxu0 0
        %723 = vmatpush1.bf16.msra.mxu0 0
        %724 = vmatprep.subr.bf16.mxu0 0
        %725 = vmatpush1.bf16.msra.mxu0 0
        %726 = vmatprep.subr.bf16.mxu0 0
        %727 = vmatpush1.bf16.msra.mxu0 0
        %728 = vmatprep.subr.bf16.mxu0 0
        %729 = vmatpush1.bf16.msra.mxu0 0
        %730 = vmatprep.subr.bf16.mxu0 0
        %731 = vmatpush1.bf16.msra.mxu0 0
        %732 = vmatprep.subr.bf16.mxu0 0
        %733 = vmatpush1.bf16.msra.mxu0 %v714
        %734 = vmatprep.subr.bf16.mxu0 0
        %735 = vmatpush2.bf16.msra.mxu0 0
        %736 = vmatprep.subr.bf16.mxu0 0
        %737 = vmatpush2.bf16.msra.mxu0 0
        %738 = vmatprep.subr.bf16.mxu0 0
        %739 = vmatpush2.bf16.msra.mxu0 0
        %740 = vmatprep.subr.bf16.mxu0 0
        %741 = vmatpush2.bf16.msra.mxu0 0
        %742 = vmatprep.subr.bf16.mxu0 0
        %743 = vmatpush2.bf16.msra.mxu0 0
        %744 = vmatprep.subr.bf16.mxu0 0
        %745 = vmatpush2.bf16.msra.mxu0 0
        %746 = vmatprep.subr.bf16.mxu0 0
        %747 = vmatpush2.bf16.msra.mxu0 0
        %748 = vmatprep.subr.bf16.mxu0 0
        %749 = vmatpush2.bf16.msra.mxu0 0
        %750 = vmatprep.mubr.bf16.mxu0 0
        %751 = vmatmul.mubr.bf16.gmra.mxu0 %v716
        %v752 = vpop.f32.mrf.mxu0
        %v753 = vadd.f32 0.0, %v752
        %v754 = vpop.f32.mrf.mxu0
        %v755 = vpop.f32.mrf.mxu0
        %v756 = vpop.f32.mrf.mxu0
        %757 = vdwg.mxu0
        %758 = vst [vmem:[#allocation4 + $0x10] sm:$0xff] %v753
        %s759 = scalar_lea.vmem %s303, 24
        %v760 = vld [vmem:[%s759] sm:$0xf]
        %v761 = vld [vmem:[%s759 + $0x4] sm:$0xf]
        %v762 = vpack.c.bf16 %v364, %v364
        %763 = vxpose.xlu0.c.b16.start [1/8] %v760, 128
        %764 = vxpose.xlu0.c.b16.cont [2/8] 0, 128
        %765 = vxpose.xlu0.c.b16.cont [3/8] 0, 128
        %766 = vxpose.xlu0.c.b16.cont [4/8] 0, 128
        %767 = vxpose.xlu0.c.b16.cont [5/8] 0, 128
        %768 = vxpose.xlu0.c.b16.cont [6/8] 0, 128
        %769 = vxpose.xlu0.c.b16.cont [7/8] 0, 128
        %770 = vxpose.xlu0.c.b16.end [8/8] 0, 128
        %v771 = vpop.trf.xlu0
        %v772 = vpop.trf.xlu0
        %v773 = vpop.trf.xlu0
        %v774 = vpop.trf.xlu0
        %v775 = vpop.trf.xlu0
        %v776 = vpop.trf.xlu0
        %v777 = vpop.trf.xlu0
        %v778 = vpop.trf.xlu0
        %v780 = vsel %vm384, %v771, 0
        %v783 = vsel %vm388, %v762, 0
        %785 = vmatprep.subr.bf16.mxu0 0
        %786 = vmatpush1.bf16.msra.mxu0 0
        %787 = vmatprep.subr.bf16.mxu0 0
        %788 = vmatpush1.bf16.msra.mxu0 0
        %789 = vmatprep.subr.bf16.mxu0 0
        %790 = vmatpush1.bf16.msra.mxu0 0
        %791 = vmatprep.subr.bf16.mxu0 0
        %792 = vmatpush1.bf16.msra.mxu0 0
        %793 = vmatprep.subr.bf16.mxu0 0
        %794 = vmatpush1.bf16.msra.mxu0 0
        %795 = vmatprep.subr.bf16.mxu0 0
        %796 = vmatpush1.bf16.msra.mxu0 0
        %797 = vmatprep.subr.bf16.mxu0 0
        %798 = vmatpush1.bf16.msra.mxu0 0
        %799 = vmatprep.subr.bf16.mxu0 0
        %800 = vmatpush1.bf16.msra.mxu0 %v783
        %801 = vmatprep.subr.bf16.mxu0 0
        %802 = vmatpush2.bf16.msra.mxu0 0
        %803 = vmatprep.subr.bf16.mxu0 0
        %804 = vmatpush2.bf16.msra.mxu0 0
        %805 = vmatprep.subr.bf16.mxu0 0
        %806 = vmatpush2.bf16.msra.mxu0 0
        %807 = vmatprep.subr.bf16.mxu0 0
        %808 = vmatpush2.bf16.msra.mxu0 0
        %809 = vmatprep.subr.bf16.mxu0 0
        %810 = vmatpush2.bf16.msra.mxu0 0
        %811 = vmatprep.subr.bf16.mxu0 0
        %812 = vmatpush2.bf16.msra.mxu0 0
        %813 = vmatprep.subr.bf16.mxu0 0
        %814 = vmatpush2.bf16.msra.mxu0 0
        %815 = vmatprep.subr.bf16.mxu0 0
        %816 = vmatpush2.bf16.msra.mxu0 0
        %817 = vmatprep.mubr.bf16.mxu0 0
        %818 = vmatmul.mubr.bf16.gmra.mxu0 %v780
        %v819 = vpop.f32.mrf.mxu0
        %v820 = vadd.f32 0.0, %v819
        %v821 = vpop.f32.mrf.mxu0
        %v822 = vpop.f32.mrf.mxu0
        %v823 = vadd.f32 0.0, %v822
        %v824 = vpop.f32.mrf.mxu0
        %825 = vdwg.mxu0
        %s826 = scalar_lea.vmem [#allocation3], 48
        %v827 = vld [vmem:[%s826] sm:$0xff]
        %v828 = vld [vmem:[%s826 + $0x8] sm:$0xff]
        %v829 = vsub.f32 %v820, %v827
        %v830 = vsub.f32 %v823, %v828
        %v831 = vmul.f32 %v829, 0.5
        %v832 = vmul.f32 %v830, 0.5
        %v833 = vadd.f32 %v827, %v831
        %v834 = vadd.f32 %v828, %v832
        %vm835 = vcmp.ge.f32.partialorder %v833, 1.0
        %vm836 = vcmp.ge.f32.partialorder %v834, 1.0
        %v837 = vsel %vm835, 0.0, %v833
        %v838 = vsel %vm836, 0.0, %v834
        %839 = vst [vmem:[%s826] sm:$0xff] %v837
        %840 = vst [vmem:[%s826 + $0x8] sm:$0xff] %v838
        %v841 = vsel %vm835, 1, 0
        %v842 = vsel %vm836, 1, 0
        %v843 = vcvt.s32.f32 %v841
        %v844 = vcvt.s32.f32 %v842
        %v845 = vpack.c.bf16 %v844, %v843
        %v847 = vsel %vm452, %v761, 0
        %849 = vmatprep.subr.bf16.mxu0 0
        %850 = vmatpush1.bf16.msra.mxu0 0
        %851 = vmatprep.subr.bf16.mxu0 0
        %852 = vmatpush1.bf16.msra.mxu0 0
        %853 = vmatprep.subr.bf16.mxu0 0
        %854 = vmatpush1.bf16.msra.mxu0 0
        %855 = vmatprep.subr.bf16.mxu0 0
        %856 = vmatpush1.bf16.msra.mxu0 0
        %857 = vmatprep.subr.bf16.mxu0 0
        %858 = vmatpush1.bf16.msra.mxu0 0
        %859 = vmatprep.subr.bf16.mxu0 0
        %860 = vmatpush1.bf16.msra.mxu0 0
        %861 = vmatprep.subr.bf16.mxu0 0
        %862 = vmatpush1.bf16.msra.mxu0 0
        %863 = vmatprep.subr.bf16.mxu0 0
        %864 = vmatpush1.bf16.msra.mxu0 %v845
        %865 = vmatprep.subr.bf16.mxu0 0
        %866 = vmatpush2.bf16.msra.mxu0 0
        %867 = vmatprep.subr.bf16.mxu0 0
        %868 = vmatpush2.bf16.msra.mxu0 0
        %869 = vmatprep.subr.bf16.mxu0 0
        %870 = vmatpush2.bf16.msra.mxu0 0
        %871 = vmatprep.subr.bf16.mxu0 0
        %872 = vmatpush2.bf16.msra.mxu0 0
        %873 = vmatprep.subr.bf16.mxu0 0
        %874 = vmatpush2.bf16.msra.mxu0 0
        %875 = vmatprep.subr.bf16.mxu0 0
        %876 = vmatpush2.bf16.msra.mxu0 0
        %877 = vmatprep.subr.bf16.mxu0 0
        %878 = vmatpush2.bf16.msra.mxu0 0
        %879 = vmatprep.subr.bf16.mxu0 0
        %880 = vmatpush2.bf16.msra.mxu0 0
        %881 = vmatprep.mubr.bf16.mxu0 0
        %882 = vmatmul.mubr.bf16.gmra.mxu0 %v847
        %v883 = vpop.f32.mrf.mxu0
        %v884 = vadd.f32 0.0, %v883
        %v885 = vpop.f32.mrf.mxu0
        %v886 = vpop.f32.mrf.mxu0
        %v887 = vpop.f32.mrf.mxu0
        %888 = vdwg.mxu0
        %889 = vst [vmem:[#allocation4 + $0x18] sm:$0xff] %v884
        %v890 = vld [vmem:[#allocation4] sm:$0xff]
        %v891 = vld [vmem:[#allocation4 + $0x8] sm:$0xff]
        %v892 = vld [vmem:[#allocation4 + $0x10] sm:$0xff]
        %v893 = vld [vmem:[#allocation4 + $0x18] sm:$0xff]
        %v894 = vld [vmem:[#allocation5] sm:$0xff]
        %v895 = vld [vmem:[#allocation5 + $0x8] sm:$0xff]
        %v896 = vld [vmem:[#allocation5 + $0x10] sm:$0xff]
        %v897 = vld [vmem:[#allocation5 + $0x18] sm:$0xff]
        %v898 = vsub.f32 %v890, %v894
        %v899 = vsub.f32 %v891, %v895
        %v900 = vsub.f32 %v892, %v896
        %v901 = vsub.f32 %v893, %v897
        %v902 = vmul.f32 %v898, 0.5
        %v903 = vmul.f32 %v899, 0.5
        %v904 = vmul.f32 %v900, 0.5
        %v905 = vmul.f32 %v901, 0.5
        %v906 = vadd.f32 %v894, %v902
        %v907 = vadd.f32 %v895, %v903
        %v908 = vadd.f32 %v896, %v904
        %v909 = vadd.f32 %v897, %v905
        %vm910 = vcmp.ge.f32.partialorder %v906, 1.0
        %vm911 = vcmp.ge.f32.partialorder %v907, 1.0
        %vm912 = vcmp.ge.f32.partialorder %v908, 1.0
        %vm913 = vcmp.ge.f32.partialorder %v909, 1.0
        %v914 = vsel %vm910, 0.0, %v906
        %v915 = vsel %vm911, 0.0, %v907
        %v916 = vsel %vm912, 0.0, %v908
        %v917 = vsel %vm913, 0.0, %v909
        %918 = vst [vmem:[#allocation5] sm:$0xff] %v914
        %919 = vst [vmem:[#allocation5 + $0x8] sm:$0xff] %v915
        %920 = vst [vmem:[#allocation5 + $0x10] sm:$0xff] %v916
        %921 = vst [vmem:[#allocation5 + $0x18] sm:$0xff] %v917
        %v922 = vsel %vm910, 1, 0
        %v923 = vsel %vm911, 1, 0
        %v924 = vsel %vm912, 1, 0
        %v925 = vsel %vm913, 1, 0
        %v926 = vcvt.s32.f32 %v922
        %v927 = vcvt.s32.f32 %v923
        %v928 = vcvt.s32.f32 %v924
        %v929 = vcvt.s32.f32 %v925
        %v930 = vpack.c.bf16 %v927, %v926
        %v931 = vpack.c.bf16 %v929, %v928
        %v932 = vld [vmem:[%s2] sm:$0xf]
        %v933 = vld [vmem:[%s2 + $0x4] sm:$0xf]
        %v934 = vld [vmem:[%s2 + $0x8] sm:$0xf]
        %v935 = vld [vmem:[%s2 + $0xc] sm:$0xf]
        %v936 = vld [vmem:[%s3] sm:$0xff]
        %v937 = vld [vmem:[%s3 + $0x8] sm:$0xff]
        %v938 = vld [vmem:[%s3 + $0x10] sm:$0xff]
        %v939 = vld [vmem:[%s3 + $0x18] sm:$0xff]
        %941 = vset.pattern.permute.xlu0 0
        %942 = vperm.xlu0 %941, %v936
        %v943 = vpop.permute.xlu0 %942
        %946 = vset.pattern.permute.xlu0 0
        %947 = vperm.xlu0 %946, %v937
        %v948 = vpop.permute.xlu0 %947
        %951 = vset.pattern.permute.xlu0 0
        %952 = vperm.xlu0 %951, %v938
        %v953 = vpop.permute.xlu0 %952
        %956 = vset.pattern.permute.xlu0 0
        %957 = vperm.xlu0 %956, %v939
        %v958 = vpop.permute.xlu0 %957
        %v964 = vunpack.c.l.b16 %v932
        %v965 = vunpack.c.l.b16 %v933
        %v966 = vunpack.c.l.b16 %v934
        %v967 = vunpack.c.l.b16 %v935
        %v968 = vpack.c.b16 %v965, %v964
        %v969 = vpack.c.b16 %v967, %v966
        %vm970 = vcmask 261120
        %v972 = vsel %vm970, %v968, 0
        %v975 = vsel %vm970, %v969, 0
        %977 = vmatprep.subr.bf16.mxu0 0
        %978 = vmatpush1.bf16.msra.mxu0 0
        %979 = vmatprep.subr.bf16.mxu0 0
        %980 = vmatpush1.bf16.msra.mxu0 0
        %981 = vmatprep.subr.bf16.mxu0 0
        %982 = vmatpush1.bf16.msra.mxu0 0
        %983 = vmatprep.subr.bf16.mxu0 0
        %984 = vmatpush1.bf16.msra.mxu0 0
        %985 = vmatprep.subr.bf16.mxu0 0
        %986 = vmatpush1.bf16.msra.mxu0 0
        %987 = vmatprep.subr.bf16.mxu0 0
        %988 = vmatpush1.bf16.msra.mxu0 0
        %989 = vmatprep.subr.bf16.mxu0 0
        %990 = vmatpush1.bf16.msra.mxu0 %v931
        %991 = vmatprep.subr.bf16.mxu0 0
        %992 = vmatpush1.bf16.msra.mxu0 %v930
        %993 = vmatprep.subr.bf16.mxu0 0
        %994 = vmatpush2.bf16.msra.mxu0 0
        %995 = vmatprep.subr.bf16.mxu0 0
        %996 = vmatpush2.bf16.msra.mxu0 0
        %997 = vmatprep.subr.bf16.mxu0 0
        %998 = vmatpush2.bf16.msra.mxu0 0
        %999 = vmatprep.subr.bf16.mxu0 0
        %1000 = vmatpush2.bf16.msra.mxu0 0
        %1001 = vmatprep.subr.bf16.mxu0 0
        %1002 = vmatpush2.bf16.msra.mxu0 0
        %1003 = vmatprep.subr.bf16.mxu0 0
        %1004 = vmatpush2.bf16.msra.mxu0 0
        %1005 = vmatprep.subr.bf16.mxu0 0
        %1006 = vmatpush2.bf16.msra.mxu0 0
        %1007 = vmatprep.subr.bf16.mxu0 0
        %1008 = vmatpush2.bf16.msra.mxu0 0
        %1009 = vmatprep.mubr.bf16.mxu0 0
        %1010 = vmatmul.mubr.bf16.gmra.mxu0 %v972
        %v1011 = vpop.f32.mrf.mxu0
        %v1012 = vadd.f32 %v943, %v1011
        %v1013 = vpop.f32.mrf.mxu0
        %v1014 = vpop.f32.mrf.mxu0
        %v1015 = vadd.f32 %v948, %v1014
        %v1016 = vpop.f32.mrf.mxu0
        %1017 = vmatprep.mubr.bf16.mxu0 0
        %1018 = vmatmul.mubr.bf16.gmra.mxu0 %v975
        %v1019 = vpop.f32.mrf.mxu0
        %v1020 = vadd.f32 %v953, %v1019
        %v1021 = vpop.f32.mrf.mxu0
        %v1022 = vpop.f32.mrf.mxu0
        %v1023 = vadd.f32 %v958, %v1022
        %v1024 = vpop.f32.mrf.mxu0
        %1025 = vdwg.mxu0
        %v1026 = vadd.f32 %v1012, %v325
        %v1027 = vadd.f32 %v1015, %v326
        %v1028 = vadd.f32 %v1020, %v327
        %v1029 = vadd.f32 %v1023, %v328
        %1030 = vst [vmem:[%s294] sm:$0xff] %v1026
        %1031 = vst [vmem:[%s294 + $0x8] sm:$0xff] %v1027
        %1032 = vst [vmem:[%s294 + $0x10] sm:$0xff] %v1028
        %1033 = vst [vmem:[%s294 + $0x18] sm:$0xff] %v1029
        %s1034 = sand.u32 %s146, 1
        %s1035 = sand.u32 %s146, 1
        %s1036 = smul.addr %s1035, 32
        %s1037 = scalar_lea.vmem [#allocation7], %s1036
        // Predicated region
        $region79: #{dssa_forward.5} parent=69 // pred_check
          %p1038 = pneg %p156
        $region80: #{dssa_forward.5} parent=69 // pred_check_branch
          %1040 = sbr.rel (%p1038) target = $region82
        $region81: #{dssa_forward.5} parent=69 // pred_region
          %s1041 = smul.addr %s20, 8
          %s1042 = sadd.s32 %s21, %s1041
          %s1043 = smul.addr %s22, 16
          %s1044 = sadd.s32 %s1042, %s1043
          %s1045 = smul.addr %s1044, 8
          %s1046 = scalar_lea.vmem %s4, %s1045
          // Predicated region
          $region83: #{dssa_forward.5} parent=81 // pred_check
            _
          $region84: #{dssa_forward.5} parent=81 // pred_check_branch
            %1048 = sbr.rel (0) target = $region86
          $region85: #{dssa_forward.5} parent=81 // pred_region
            // Predicated region
            $region87: #{dssa_forward.5} parent=85 // pred_check
              _
            $region88: #{dssa_forward.5} parent=85 // pred_check_branch
              %1050 = sbr.rel (0) target = $region90
            $region89: #{dssa_forward.5} parent=85 // pred_region
              // Predicated region
              $region102: #{dssa_forward.5} parent=89 // pred_check
                _
              $region103: #{dssa_forward.5} parent=89 // pred_check_branch
                %1072 = sbr.rel (0) target = $region105
              $region104: #{dssa_forward.5} parent=89 // pred_region
                loop: start=0, step=1, limit=1
                $region106: #{dssa_forward.5} parent=104 // loop_pre_header
                  _
                $region107: #{dssa_forward.5} parent=104 // loop_header
                  %s1074 = sphi 0, %s1078
                  %p1075 = scmp.ge.s32.totalorder %s1074, 1
                  %s1079 = sphi %s1037, %s1037
                  %s1080 = sphi %s1046, %s1046
                $region108: #{dssa_forward.5} parent=104 // loop_header_branch
                  %1077 = sbr.rel (%p1075) target = $region112
                $region109: #{dssa_forward.5} parent=104 // loop_body
                  %v1081 = vld [vmem:[%s1079] sm:$0xff]
                  %1082 = vst [vmem:[%s1080] sm:$0xff] %v1081
                  %v1083 = vld [vmem:[%s1079 + $0x8] sm:$0xff]
                  %1084 = vst [vmem:[%s1080 + $0x10] sm:$0xff] %v1083
                  %v1085 = vld [vmem:[%s1079 + $0x10] sm:$0xff]
                  %1086 = vst [vmem:[%s1080 + $0x20] sm:$0xff] %v1085
                  %v1087 = vld [vmem:[%s1079 + $0x18] sm:$0xff]
                  %1088 = vst [vmem:[%s1080 + $0x30] sm:$0xff] %v1087
                $region110: #{dssa_forward.5} parent=104 // loop_footer
                  %s1078 = sadd.s32 1, %s1074
                $region111: #{dssa_forward.5} parent=104 // loop_footer_branch
                  %1073 = sbr.rel target = $region107
                $region112: #{dssa_forward.5} parent=104 // loop_exit
                  _
              $region105: #{dssa_forward.5} parent=89 // pred_fallthru
                _
              // Predicated region
              $region113: #{dssa_forward.5} parent=89 // pred_check
                _
              $region114: #{dssa_forward.5} parent=89 // pred_check_branch
                %1090 = sbr.rel target = $region116
              $region115: #{dssa_forward.5} parent=89 // pred_region
                _
              $region116: #{dssa_forward.5} parent=89 // pred_fallthru
                _
            $region90: #{dssa_forward.5} parent=85 // pred_fallthru
              _
            // Predicated region
            $region91: #{dssa_forward.5} parent=85 // pred_check
              _
            $region92: #{dssa_forward.5} parent=85 // pred_check_branch
              %1052 = sbr.rel target = $region94
            $region93: #{dssa_forward.5} parent=85 // pred_region
              %s1054 = ssub.s32 256, 1
              loop: start=0, step=1, limit=1
              $region95: #{dssa_forward.5} parent=93 // loop_pre_header
                _
              $region96: #{dssa_forward.5} parent=93 // loop_header
                %s1056 = sphi 0, %s1060
                %p1057 = scmp.ge.s32.totalorder %s1056, 1
                %s1061 = sphi %s1037, %s1037
                %s1062 = sphi %s1046, %s1046
              $region97: #{dssa_forward.5} parent=93 // loop_header_branch
                %1059 = sbr.rel (%p1057) target = $region101
              $region98: #{dssa_forward.5} parent=93 // loop_body
                %v1063 = vld [vmem:[%s1061] sm:%s1054]
                %1064 = vst [vmem:[%s1062] sm:%s1054] %v1063
                %v1065 = vld [vmem:[%s1061 + $0x8] sm:%s1054]
                %1066 = vst [vmem:[%s1062 + $0x10] sm:%s1054] %v1065
                %v1067 = vld [vmem:[%s1061 + $0x10] sm:%s1054]
                %1068 = vst [vmem:[%s1062 + $0x20] sm:%s1054] %v1067
                %v1069 = vld [vmem:[%s1061 + $0x18] sm:%s1054]
                %1070 = vst [vmem:[%s1062 + $0x30] sm:%s1054] %v1069
              $region99: #{dssa_forward.5} parent=93 // loop_footer
                %s1060 = sadd.s32 1, %s1056
              $region100: #{dssa_forward.5} parent=93 // loop_footer_branch
                %1055 = sbr.rel target = $region96
              $region101: #{dssa_forward.5} parent=93 // loop_exit
                _
            $region94: #{dssa_forward.5} parent=85 // pred_fallthru
              _
          $region86: #{dssa_forward.5} parent=81 // pred_fallthru
            _
          %1091 = vnop
        $region82: #{dssa_forward.5} parent=69 // pred_fallthru
          _
      $region70: #{dssa_forward.5} parent=5 // pred_fallthru
        _
      %p1092 = scmp.le.s32.totalorder 2, %s10
      // Predicated region
      $region117: #{dssa_forward.5} parent=5 // pred_check
        %p1093 = pneg %p1092
      $region118: #{dssa_forward.5} parent=5 // pred_check_branch
        %1095 = sbr.rel (%p1093) target = $region120
      $region119: #{dssa_forward.5} parent=5 // pred_region
        %s1096 = ssub.s32 %s10, 2
        // Predicated region
        $region121: #{dssa_forward.5} parent=119 // pred_check
          %p1097 = pneg %p162
        $region122: #{dssa_forward.5} parent=119 // pred_check_branch
          %1099 = sbr.rel (%p1097) target = $region124
        $region123: #{dssa_forward.5} parent=119 // pred_region
          %s1100 = sand.u32 %s147, 1
          %s1101 = sand.u32 %s147, 1
          %s1102 = smul.addr %s1101, 32
          %s1103 = scalar_lea.vmem [#allocation7], %s1102
        $region124: #{dssa_forward.5} parent=119 // pred_fallthru
          _
      $region120: #{dssa_forward.5} parent=5 // pred_fallthru
        _
    $region6: #{dssa_forward.5} parent=1 // loop_footer
      %s14 = sadd.s32 1, %s10
    $region7: #{dssa_forward.5} parent=1 // loop_footer_branch
      %9 = sbr.rel target = $region3
    $region8: #{dssa_forward.5} parent=1 // loop_exit
      _

</llo_original>
